<compile_context>
chip_gen: v7x
topology: tpu7x:2x2x1
jax: 0.10.0
libtpu: 0.0.40
codegen_flags: <defaults>
</compile_context>

<pallas_src>
import jax
import jax.numpy as jnp
from jax.experimental import pallas as pl
from jax.experimental.pallas import tpu as pltpu


# --------------------------------------------------------------------------
# Kernels
# --------------------------------------------------------------------------

def ffn_resident_kernel(x_ref, w1_ref, b1_ref, w2_ref, b2_ref, g_ref, beta_ref,
                        o_ref):
    """Weights fully resident in VMEM; grid = (row tiles,)."""
    x_bf16 = x_ref[...].astype(jnp.bfloat16)
    h = jnp.dot(x_bf16, w1_ref[...], preferred_element_type=jnp.float32)
    h = jnp.maximum(h + b1_ref[...], 0.0)
    y = jnp.dot(h.astype(jnp.bfloat16), w2_ref[...],
                preferred_element_type=jnp.float32)

    # Residual + LayerNorm epilogue in f32 (x is already f32).
    r = x_ref[...] + y + b2_ref[...]
    mean = jnp.mean(r, axis=-1, keepdims=True)
    c = r - mean
    var = jnp.mean(c * c, axis=-1, keepdims=True)
    inv = jax.lax.rsqrt(var + 1e-5)
    o_ref[...] = (c * inv * g_ref[...] + beta_ref[...]).astype(o_ref.dtype)


def ffn_ktiled_kernel(x_ref, w1_ref, b1_ref, w2_ref, b2_ref, g_ref, beta_ref,
                      o_ref, acc_ref, xbf_ref):
    """Grid = (row tiles, d_ff chunks).  d_ff is the reduction axis (last)."""
    k = pl.program_id(1)

    @pl.when(k == 0)
    def _():
        acc_ref[...] = jnp.zeros_like(acc_ref)
        # Hoisted cast: x tile is resident across k, cast it once per row tile.
        xbf_ref[...] = x_ref[...].astype(jnp.bfloat16)

    # fc1 chunk + ReLU (bf16 operands, f32 accumulation on the MXU).
    h = jnp.dot(xbf_ref[...], w1_ref[...], preferred_element_type=jnp.float32)
    h = jnp.maximum(h + b1_ref[...], 0.0)

    # fc2 partial product over this d_ff chunk, accumulate in f32.
    acc_ref[...] += jnp.dot(h.astype(jnp.bfloat16), w2_ref[...],
                            preferred_element_type=jnp.float32)

    # Epilogue on the last d_ff chunk: bias2, residual, LayerNorm (all f32).
    @pl.when(k == pl.num_programs(1) - 1)
    def _():
        r = x_ref[...] + acc_ref[...] + b2_ref[...]
        mean = jnp.mean(r, axis=-1, keepdims=True)
        c = r - mean
        var = jnp.mean(c * c, axis=-1, keepdims=True)
        inv = jax.lax.rsqrt(var + 1e-5)
        o_ref[...] = (c * inv * g_ref[...] + beta_ref[...]).astype(o_ref.dtype)


# --------------------------------------------------------------------------
# Hardware query / tiling heuristics
# --------------------------------------------------------------------------

def _hw():
    """(physical VMEM bytes, TensorCores per chip), with safe fallbacks."""
    vmem_phys = 128 * 1024 * 1024
    n_cores = 1
    try:
        info = pltpu.get_tpu_info()
        v = getattr(info, "vmem_capacity_bytes", None)
        if v:
            vmem_phys = int(v)
        for name in ("num_tensorcores", "tensorcores_per_chip", "num_cores",
                     "cores_per_chip", "num_tensor_cores"):
            c = getattr(info, name, None)
            if c:
                n_cores = int(c)
                break
    except Exception:
        pass
    return vmem_phys, n_cores


def _pick_tm(n_rows, candidates, min_steps, fits):
    """Largest candidate dividing n_rows that passes `fits`; prefer ones that
    leave >= min_steps grid steps on the parallel axis (megacore)."""
    divisors = [c for c in candidates if n_rows % c == 0 and fits(c)]
    if not divisors:
        return None
    preferred = [c for c in divisors if n_rows // c >= min_steps]
    return preferred[0] if preferred else divisors[0]


def _resident_fits(tm, d_model, d_ff, budget):
    io_tiles = 2 * 2 * tm * d_model * 4            # x + out tiles, double-buffered f32
    weights = 2 * (2 * d_model * d_ff * 2)         # W1+W2 bf16 (conservative x2 buffers)
    h_tmp = tm * d_ff * (4 + 2)                    # f32 fc1 activation + bf16 copy
    misc = tm * d_model * 2 + 8 * (d_model + d_ff) * 4
    return io_tiles + weights + h_tmp + misc <= budget


def _ktiled_fits(tm, tk, d_model, budget):
    io_tiles = 2 * 2 * tm * d_model * 4            # x + out tiles, double-buffered f32
    w_chunks = 2 * 2 * (d_model * tk * 2)          # W1/W2 chunks, double-buffered bf16
    acc = tm * d_model * 4
    xbf = tm * d_model * 2
    h_tmp = tm * tk * (4 + 2)
    misc = 8 * (d_model + tk) * 4
    return io_tiles + w_chunks + acc + xbf + h_tmp + misc <= budget


# --------------------------------------------------------------------------
# Wrapper
# --------------------------------------------------------------------------

def feed_forward(x, w1, b1, w2, b2, gamma, beta, *, tm=None, tk=None,
                 force_k_tiled=False):
    """x: (N, d_model) float32. Returns (N, d_model) float32."""
    N, d_model = x.shape
    d_ff = w1.shape[1]

    vmem_phys, n_cores = _hw()
    vmem_limit = max(32 * 1024 * 1024,
                     min(int(vmem_phys * 0.8), 110 * 1024 * 1024))
    budget = int(vmem_limit * 0.85)
    min_steps = max(1, n_cores)

    # bf16 weights: halves weight HBM/VMEM footprint and hits bf16 MXU peak.
    w1_bf = w1.astype(jnp.bfloat16)
    w2_bf = w2.astype(jnp.bfloat16)

    # biases / affine params as (1, D), kept f32.
    b1_2d = b1.reshape(1, d_ff).astype(jnp.float32)
    b2_2d = b2.reshape(1, d_model).astype(jnp.float32)
    g_2d = gamma.reshape(1, d_model).astype(jnp.float32)
    beta_2d = beta.reshape(1, d_model).astype(jnp.float32)

    tm_candidates = [tm] if tm is not None else [1024, 512, 256, 128, 64, 32, 16, 8]

    # ---------------- Weights-resident fast path ----------------
    resident_tm = None
    if not force_k_tiled:
        resident_tm = _pick_tm(
            N, tm_candidates, min_steps,
            lambda c: _resident_fits(c, d_model, d_ff, budget))

    if resident_tm is not None:
        tm_r = resident_tm
        grid = (N // tm_r,)
        flops = 4 * N * d_model * d_ff
        bytes_accessed = (x.size * 4 + N * d_model * 4
                          + w1_bf.size * 2 + w2_bf.size * 2
                          + (b1_2d.size + b2_2d.size + g_2d.size + beta_2d.size) * 4)
        return pl.pallas_call(
            ffn_resident_kernel,
            out_shape=jax.ShapeDtypeStruct((N, d_model), x.dtype),
            grid_spec=pltpu.PrefetchScalarGridSpec(
                num_scalar_prefetch=0,
                grid=grid,
                in_specs=[
                    pl.BlockSpec((tm_r, d_model), lambda i: (i, 0)),   # x tile
                    pl.BlockSpec((d_model, d_ff), lambda i: (0, 0)),   # W1 (resident)
                    pl.BlockSpec((1, d_ff), lambda i: (0, 0)),         # b1
                    pl.BlockSpec((d_ff, d_model), lambda i: (0, 0)),   # W2 (resident)
                    pl.BlockSpec((1, d_model), lambda i: (0, 0)),      # b2
                    pl.BlockSpec((1, d_model), lambda i: (0, 0)),      # gamma
                    pl.BlockSpec((1, d_model), lambda i: (0, 0)),      # beta
                ],
                out_specs=pl.BlockSpec((tm_r, d_model), lambda i: (i, 0)),
            ),
            compiler_params=pltpu.CompilerParams(
                dimension_semantics=("parallel",),
                vmem_limit_bytes=vmem_limit,
            ),
            cost_estimate=pl.CostEstimate(
                flops=flops, transcendentals=N, bytes_accessed=bytes_accessed),
        )(x, w1_bf, b1_2d, w2_bf, b2_2d, g_2d, beta_2d)

    # ---------------- K-tiled path (weights too big for VMEM) ----------------
    tk_candidates = [tk] if tk is not None else [1024, 512, 256, 128]

    best = None
    for tkc in tk_candidates:
        if d_ff % tkc != 0:
            continue
        tmc = _pick_tm(N, tm_candidates, min_steps,
                       lambda c, _tk=tkc: _ktiled_fits(c, _tk, d_model, budget))
        if tmc is None:
            continue
        if best is None or (tmc, tkc) > best:
            best = (tmc, tkc)
    if best is None:
        # Fallback: smallest dividing tiles (fit estimate ignored).
        tm_fb = next((c for c in reversed(tm_candidates) if N % c == 0), None)
        tk_fb = next((c for c in reversed(tk_candidates) if d_ff % c == 0), None)
        assert tm_fb is not None and tk_fb is not None, (
            f"no valid tiling for N={N}, d_ff={d_ff}")
        best = (tm_fb, tk_fb)
    tm_k, tk_k = best

    grid = (N // tm_k, d_ff // tk_k)

    flops = 4 * N * d_model * d_ff
    # Weights are re-streamed once per row tile in this path.
    bytes_accessed = (x.size * 4 + N * d_model * 4
                      + grid[0] * (w1_bf.size * 2 + w2_bf.size * 2)
                      + (b1_2d.size + b2_2d.size + g_2d.size + beta_2d.size) * 4)

    return pl.pallas_call(
        ffn_ktiled_kernel,
        out_shape=jax.ShapeDtypeStruct((N, d_model), x.dtype),
        grid_spec=pltpu.PrefetchScalarGridSpec(
            num_scalar_prefetch=0,
            grid=grid,
            in_specs=[
                pl.BlockSpec((tm_k, d_model), lambda i, k: (i, 0)),   # x (resident over k)
                pl.BlockSpec((d_model, tk_k), lambda i, k: (0, k)),   # W1 d_ff-chunk
                pl.BlockSpec((1, tk_k), lambda i, k: (0, k)),         # b1 chunk
                pl.BlockSpec((tk_k, d_model), lambda i, k: (k, 0)),   # W2 d_ff-chunk
                pl.BlockSpec((1, d_model), lambda i, k: (0, 0)),      # b2
                pl.BlockSpec((1, d_model), lambda i, k: (0, 0)),      # gamma
                pl.BlockSpec((1, d_model), lambda i, k: (0, 0)),      # beta
            ],
            out_specs=pl.BlockSpec((tm_k, d_model), lambda i, k: (i, 0)),
            scratch_shapes=[
                pltpu.VMEM((tm_k, d_model), jnp.float32),    # f32 accumulator
                pltpu.VMEM((tm_k, d_model), jnp.bfloat16),   # hoisted bf16 x cast
            ],
        ),
        compiler_params=pltpu.CompilerParams(
            dimension_semantics=("parallel", "arbitrary"),
            vmem_limit_bytes=vmem_limit,
        ),
        cost_estimate=pl.CostEstimate(
            flops=flops, transcendentals=N, bytes_accessed=bytes_accessed),
    )(x, w1_bf, b1_2d, w2_bf, b2_2d, g_2d, beta_2d)


# --------------------------------------------------------------------------
# Reference + test
# --------------------------------------------------------------------------

def reference(x, w1, b1, w2, b2, gamma, beta):
    # Matches kernel numerics: bf16 MXU operands, f32 accumulation, f32 epilogue.
    h = jnp.dot(x.astype(jnp.bfloat16), w1.astype(jnp.bfloat16),
                preferred_element_type=jnp.float32) + b1
    h = jnp.maximum(h, 0.0)
    y = jnp.dot(h.astype(jnp.bfloat16), w2.astype(jnp.bfloat16),
                preferred_element_type=jnp.float32) + b2
    r = x + y
    mean = jnp.mean(r, axis=-1, keepdims=True)
    var = jnp.mean((r - mean) ** 2, axis=-1, keepdims=True)
    return (r - mean) * jax.lax.rsqrt(var + 1e-5) * gamma + beta


if __name__ == "__main__":
    # Small shapes consistent with the module (module defaults d_model=512, d_ff=2048).
    B, S, d_model, d_ff = 2, 128, 256, 512
    key = jax.random.PRNGKey(0)
    k_x, k_w1, k_b1, k_w2, k_b2 = jax.random.split(key, 5)

    x = jax.random.normal(k_x, (B, S, d_model), dtype=jnp.float32)

    # Deterministic parameter init (uniform, like nn.Linear's kaiming-uniform scale).
    bound1 = 1.0 / (d_model ** 0.5)
    bound2 = 1.0 / (d_ff ** 0.5)
    w1 = jax.random.uniform(k_w1, (d_model, d_ff), jnp.float32, -bound1, bound1)
    b1 = jax.random.uniform(k_b1, (d_ff,), jnp.float32, -bound1, bound1)
    w2 = jax.random.uniform(k_w2, (d_ff, d_model), jnp.float32, -bound2, bound2)
    b2 = jax.random.uniform(k_b2, (d_model,), jnp.float32, -bound2, bound2)
    gamma = jnp.ones((d_model,), jnp.float32)
    beta = jnp.zeros((d_model,), jnp.float32)

    x2d = x.reshape(B * S, d_model)
    ref = reference(x2d, w1, b1, w2, b2, gamma, beta)

    # Auto path (weights-resident for these shapes).
    out2d = feed_forward(x2d, w1, b1, w2, b2, gamma, beta)
    jax.block_until_ready(out2d)
    assert jnp.allclose(out2d, ref, atol=2e-2, rtol=2e-2), "mismatch (resident path)"

    # Exercise the k-tiled fallback path as well (forced, small tiles).
    out2d_kt = feed_forward(x2d, w1, b1, w2, b2, gamma, beta,
                            force_k_tiled=True, tm=128, tk=128)
    jax.block_until_ready(out2d_kt)
    assert jnp.allclose(out2d_kt, ref, atol=2e-2, rtol=2e-2), "mismatch (k-tiled path)"

    out = out2d.reshape(B, S, d_model)
    jax.block_until_ready(out)
    print("KERNEL_OK")
</pallas_src>

<mosaic_0001>
module attributes {stable_mosaic.version = 11 : i64} {
  func.func @ffn_resident_kernel(%arg0: i32, %arg1: memref<256x256xf32, #tpu.memory_space<vmem>>, %arg2: memref<256x512xbf16, #tpu.memory_space<vmem>>, %arg3: memref<1x512xf32, #tpu.memory_space<vmem>>, %arg4: memref<512x256xbf16, #tpu.memory_space<vmem>>, %arg5: memref<1x256xf32, #tpu.memory_space<vmem>>, %arg6: memref<1x256xf32, #tpu.memory_space<vmem>>, %arg7: memref<1x256xf32, #tpu.memory_space<vmem>>, %arg8: memref<256x256xf32, #tpu.memory_space<vmem>>) attributes {dimension_semantics = [#tpu.dimension_semantics<parallel>], iteration_bounds = array<i64: 1>, scalar_prefetch = 0 : i64, scratch_operands = 0 : i64, tpu.core_type = #tpu.core_type<tc>, window_params = [{transform_indices = @transform_0, window_bounds = array<i64: 256, 256>}, {pipeline_mode = #tpu.pipeline_mode<synchronous>, transform_indices = @transform_1, window_bounds = array<i64: 256, 512>}, {pipeline_mode = #tpu.pipeline_mode<synchronous>, transform_indices = @transform_2, window_bounds = array<i64: 1, 512>}, {pipeline_mode = #tpu.pipeline_mode<synchronous>, transform_indices = @transform_3, window_bounds = array<i64: 512, 256>}, {pipeline_mode = #tpu.pipeline_mode<synchronous>, transform_indices = @transform_4, window_bounds = array<i64: 1, 256>}, {pipeline_mode = #tpu.pipeline_mode<synchronous>, transform_indices = @transform_5, window_bounds = array<i64: 1, 256>}, {pipeline_mode = #tpu.pipeline_mode<synchronous>, transform_indices = @transform_6, window_bounds = array<i64: 1, 256>}, {transform_indices = @transform_7, window_bounds = array<i64: 256, 256>}]} {
    %c0 = arith.constant 0 : index
    %c0_0 = arith.constant 0 : index
    %0 = vector.load %arg1[%c0, %c0_0] : memref<256x256xf32, #tpu.memory_space<vmem>>, vector<256x256xf32>
    %1 = arith.truncf %0 : vector<256x256xf32> to vector<256x256xbf16>
    %c0_1 = arith.constant 0 : index
    %c0_2 = arith.constant 0 : index
    %2 = vector.load %arg2[%c0_1, %c0_2] : memref<256x512xbf16, #tpu.memory_space<vmem>>, vector<256x512xbf16>
    %cst = arith.constant dense<0.000000e+00> : vector<256x512xf32>
    %3 = tpu.matmul %1, %2, %cst {dimension_numbers = #tpu.dot_dimension_numbers<[1], [0], [0], [1], [0, 0, 1, 1], [], []>} : vector<256x256xbf16>, vector<256x512xbf16>, vector<256x512xf32> -> vector<256x512xf32>
    %c0_3 = arith.constant 0 : index
    %c0_4 = arith.constant 0 : index
    %4 = vector.load %arg3[%c0_3, %c0_4] : memref<1x512xf32, #tpu.memory_space<vmem>>, vector<1x512xf32>
    %5 = vector.broadcast %4 : vector<1x512xf32> to vector<256x512xf32>
    %6 = arith.addf %3, %5 : vector<256x512xf32>
    %cst_5 = arith.constant 0.000000e+00 : f32
    %7 = vector.broadcast %cst_5 : f32 to vector<256x512xf32>
    %8 = arith.maximumf %6, %7 : vector<256x512xf32>
    %9 = arith.truncf %8 : vector<256x512xf32> to vector<256x512xbf16>
    %c0_6 = arith.constant 0 : index
    %c0_7 = arith.constant 0 : index
    %10 = vector.load %arg4[%c0_6, %c0_7] : memref<512x256xbf16, #tpu.memory_space<vmem>>, vector<512x256xbf16>
    %cst_8 = arith.constant dense<0.000000e+00> : vector<256x256xf32>
    %11 = tpu.matmul %9, %10, %cst_8 {dimension_numbers = #tpu.dot_dimension_numbers<[1], [0], [0], [1], [0, 0, 1, 1], [], []>} : vector<256x512xbf16>, vector<512x256xbf16>, vector<256x256xf32> -> vector<256x256xf32>
    %c0_9 = arith.constant 0 : index
    %c0_10 = arith.constant 0 : index
    %12 = vector.load %arg1[%c0_9, %c0_10] : memref<256x256xf32, #tpu.memory_space<vmem>>, vector<256x256xf32>
    %13 = arith.addf %12, %11 : vector<256x256xf32>
    %c0_11 = arith.constant 0 : index
    %c0_12 = arith.constant 0 : index
    %14 = vector.load %arg5[%c0_11, %c0_12] : memref<1x256xf32, #tpu.memory_space<vmem>>, vector<1x256xf32>
    %15 = vector.broadcast %14 : vector<1x256xf32> to vector<256x256xf32>
    %16 = arith.addf %13, %15 : vector<256x256xf32>
    %cst_13 = arith.constant dense<0.000000e+00> : vector<256xf32>
    %17 = vector.multi_reduction <add>, %16, %cst_13 [1] : vector<256x256xf32> to vector<256xf32>
    %18 = vector.shape_cast %17 : vector<256xf32> to vector<256x1xf32>
    %cst_14 = arith.constant 2.560000e+02 : f32
    %19 = vector.broadcast %cst_14 : f32 to vector<256x1xf32>
    %20 = arith.divf %18, %19 : vector<256x1xf32>
    %21 = vector.broadcast %20 : vector<256x1xf32> to vector<256x256xf32>
    %22 = arith.subf %16, %21 : vector<256x256xf32>
    %23 = arith.mulf %22, %22 : vector<256x256xf32>
    %cst_15 = arith.constant dense<0.000000e+00> : vector<256xf32>
    %24 = vector.multi_reduction <add>, %23, %cst_15 [1] : vector<256x256xf32> to vector<256xf32>
    %25 = vector.shape_cast %24 : vector<256xf32> to vector<256x1xf32>
    %cst_16 = arith.constant 2.560000e+02 : f32
    %26 = vector.broadcast %cst_16 : f32 to vector<256x1xf32>
    %27 = arith.divf %25, %26 : vector<256x1xf32>
    %cst_17 = arith.constant 9.99999974E-6 : f32
    %28 = vector.broadcast %cst_17 : f32 to vector<256x1xf32>
    %29 = arith.addf %27, %28 : vector<256x1xf32>
    %30 = math.rsqrt %29 : vector<256x1xf32>
    %31 = vector.broadcast %30 : vector<256x1xf32> to vector<256x256xf32>
    %32 = arith.mulf %22, %31 : vector<256x256xf32>
    %c0_18 = arith.constant 0 : index
    %c0_19 = arith.constant 0 : index
    %33 = vector.load %arg6[%c0_18, %c0_19] : memref<1x256xf32, #tpu.memory_space<vmem>>, vector<1x256xf32>
    %34 = vector.broadcast %33 : vector<1x256xf32> to vector<256x256xf32>
    %35 = arith.mulf %32, %34 : vector<256x256xf32>
    %c0_20 = arith.constant 0 : index
    %c0_21 = arith.constant 0 : index
    %36 = vector.load %arg7[%c0_20, %c0_21] : memref<1x256xf32, #tpu.memory_space<vmem>>, vector<1x256xf32>
    %37 = vector.broadcast %36 : vector<1x256xf32> to vector<256x256xf32>
    %38 = arith.addf %35, %37 : vector<256x256xf32>
    %c0_22 = arith.constant 0 : index
    %c0_23 = arith.constant 0 : index
    %39 = vector.load %arg8[%c0_22, %c0_23] : memref<256x256xf32, #tpu.memory_space<vmem>>, vector<256x256xf32>
    tpu.vector_store %arg8[%c0_22, %c0_23], %38 {strides = array<i32>} : memref<256x256xf32, #tpu.memory_space<vmem>>, vector<256x256xf32>,
    return
  }
  func.func @transform_0(%arg0: i32) -> (i32, i32) {
    %c0_i32 = arith.constant 0 : i32
    %c0_i32_0 = arith.constant 0 : i32
    return %arg0, %c0_i32 : i32, i32
  }
  func.func @transform_1(%arg0: i32) -> (i32, i32) {
    %c0_i32 = arith.constant 0 : i32
    %c0_i32_0 = arith.constant 0 : i32
    %c0_i32_1 = arith.constant 0 : i32
    return %c0_i32, %c0_i32_0 : i32, i32
  }
  func.func @transform_2(%arg0: i32) -> (i32, i32) {
    %c0_i32 = arith.constant 0 : i32
    %c0_i32_0 = arith.constant 0 : i32
    %c0_i32_1 = arith.constant 0 : i32
    return %c0_i32, %c0_i32_0 : i32, i32
  }
  func.func @transform_3(%arg0: i32) -> (i32, i32) {
    %c0_i32 = arith.constant 0 : i32
    %c0_i32_0 = arith.constant 0 : i32
    %c0_i32_1 = arith.constant 0 : i32
    return %c0_i32, %c0_i32_0 : i32, i32
  }
  func.func @transform_4(%arg0: i32) -> (i32, i32) {
    %c0_i32 = arith.constant 0 : i32
    %c0_i32_0 = arith.constant 0 : i32
    %c0_i32_1 = arith.constant 0 : i32
    return %c0_i32, %c0_i32_0 : i32, i32
  }
  func.func @transform_5(%arg0: i32) -> (i32, i32) {
    %c0_i32 = arith.constant 0 : i32
    %c0_i32_0 = arith.constant 0 : i32
    %c0_i32_1 = arith.constant 0 : i32
    return %c0_i32, %c0_i32_0 : i32, i32
  }
  func.func @transform_6(%arg0: i32) -> (i32, i32) {
    %c0_i32 = arith.constant 0 : i32
    %c0_i32_0 = arith.constant 0 : i32
    %c0_i32_1 = arith.constant 0 : i32
    return %c0_i32, %c0_i32_0 : i32, i32
  }
  func.func @transform_7(%arg0: i32) -> (i32, i32) {
    %c0_i32 = arith.constant 0 : i32
    %c0_i32_0 = arith.constant 0 : i32
    return %arg0, %c0_i32 : i32, i32
  }
}

</mosaic_0001>

<llo_original>
// kernel: tpu_custom_call.1
$region0: #{tpu_custom_call.1}
  #allocation0 [shape = 'u32[]', space=smem, size = 0x4, offset = 0x4, fixed_abs, tag = 'smem constant byte address 0x4 - core index']
  #allocation1 [shape = 'u32[144,128]{1,0:T(1,128)}', space=vmem, size = 0x12000, scoped, tag = 'internal scratch']
  %s0 = inlined_call_operand.hbm [shape: f32[256,256], index: 0, kind: input, shape index: {}]
  %s1 = inlined_call_operand.hbm [shape: bf16[256,512], index: 1, kind: input, shape index: {}]
  %s2 = inlined_call_operand.hbm [shape: f32[1,512], index: 2, kind: input, shape index: {}]
  %s3 = inlined_call_operand.hbm [shape: bf16[512,256], index: 3, kind: input, shape index: {}]
  %s4 = inlined_call_operand.hbm [shape: f32[1,256], index: 4, kind: input, shape index: {}]
  %s5 = inlined_call_operand.hbm [shape: f32[1,256], index: 5, kind: input, shape index: {}]
  %s6 = inlined_call_operand.hbm [shape: f32[1,256], index: 6, kind: input, shape index: {}]
  %s7 = inlined_call_operand.hbm [shape: f32[256,256], index: 7, kind: output, shape index: {}]
  %s8 = sld [smem:[#allocation0]]
  $region66: #{tpu_custom_call.1} parent=0
    _
  %s10 = ssub.s32 1, %s8
  %s11 = scalar_select 0, %s10, %s8
  $region1: #{tpu_custom_call.1} parent=0
    #allocation2 [shape = 'u8[262144]{0}', space=vmem, size = 0x40000, scoped, tag = 'input window, operand 0, single buffered']
    #allocation3 [shape = 's32[1]{0}', space=sflag, size = 0x4, scoped, tag = 'scoped memory for tpu_custom_call.1']
    #allocation4 [shape = 's32[1]{0}', space=sflag, size = 0x4, scoped, tag = 'scoped memory for tpu_custom_call.1']
    #allocation5 [shape = 'u8[262144]{0}', space=vmem, size = 0x40000, scoped, tag = 'input window, operand 1, single buffered']
    #allocation6 [shape = 's32[1]{0}', space=sflag, size = 0x4, scoped, tag = 'scoped memory for tpu_custom_call.1']
    #allocation7 [shape = 'u8[2048]{0}', space=vmem, size = 0x800, scoped, tag = 'input window, operand 2, single buffered']
    #allocation8 [shape = 'u8[262144]{0}', space=vmem, size = 0x40000, scoped, tag = 'input window, operand 3, single buffered']
    #allocation9 [shape = 's32[1]{0}', space=sflag, size = 0x4, scoped, tag = 'scoped memory for tpu_custom_call.1']
    #allocation10 [shape = 'u8[1024]{0}', space=vmem, size = 0x400, scoped, tag = 'input window, operand 4, single buffered']
    #allocation11 [shape = 'u8[1024]{0}', space=vmem, size = 0x400, scoped, tag = 'input window, operand 5, single buffered']
    #allocation12 [shape = 's32[1]{0}', space=sflag, size = 0x4, scoped, tag = 'scoped memory for tpu_custom_call.1']
    #allocation13 [shape = 'u8[1024]{0}', space=vmem, size = 0x400, scoped, tag = 'input window, operand 6, single buffered']
    #allocation14 [shape = 'u8[262144]{0}', space=vmem, size = 0x40000, scoped, tag = 'output window, operand 0, single buffered']
    %12 = vsyncpa [#allocation3], 0
    %13 = vsyncpa [#allocation6], 0
    %14 = vsyncpa [#allocation9], 0
    %15 = vsyncpa [#allocation12], 0
    %16 = vsyncpa [#allocation4], 0
    // Predicated region
    $region2: #{tpu_custom_call.1} parent=1 // pred_check
      _
    $region3: #{tpu_custom_call.1} parent=1 // pred_check_branch
      %18 = sbr.rel (0) target = $region5
    $region4: #{tpu_custom_call.1} parent=1 // pred_region
      %s20 = ssub.s32 8192, 8192
      %21 = vsyncadd [#allocation3], %s20
      %s22 = sshll.u32 [#allocation2], 4
      %s23 = int_to_ptr.vmem [resolvable:$true] %s22
      %28 = dma.hbm_to_vmem [thread:$0]  %s0, 8192, %s23, [#allocation3], 256, 256, 16
    $region5: #{tpu_custom_call.1} parent=1 // pred_fallthru
      _
    // Predicated region
    $region6: #{tpu_custom_call.1} parent=1 // pred_check
      _
    $region7: #{tpu_custom_call.1} parent=1 // pred_check_branch
      %30 = sbr.rel (0) target = $region9
    $region8: #{tpu_custom_call.1} parent=1 // pred_region
      %s32 = ssub.s32 8192, 8192
      %33 = vsyncadd [#allocation6], %s32
      %s34 = sshll.u32 [#allocation5], 4
      %s35 = int_to_ptr.vmem [resolvable:$true] %s34
      %40 = dma.hbm_to_vmem [thread:$0]  %s1, 8192, %s35, [#allocation6], 256, 256, 16
    $region9: #{tpu_custom_call.1} parent=1 // pred_fallthru
      _
    // Predicated region
    $region10: #{tpu_custom_call.1} parent=1 // pred_check
      _
    $region11: #{tpu_custom_call.1} parent=1 // pred_check_branch
      %42 = sbr.rel (0) target = $region13
    $region12: #{tpu_custom_call.1} parent=1 // pred_region
      %s44 = ssub.s32 64, 64
      %45 = vsyncadd [#allocation6], %s44
      %s47 = sshll.u32 [#allocation7], 4
      %s48 = int_to_ptr.vmem [resolvable:$true] %s47
      %50 = dma.hbm_to_vmem [thread:$0]  %s2, 64, %s48, [#allocation6]
    $region13: #{tpu_custom_call.1} parent=1 // pred_fallthru
      _
    // Predicated region
    $region14: #{tpu_custom_call.1} parent=1 // pred_check
      _
    $region15: #{tpu_custom_call.1} parent=1 // pred_check_branch
      %52 = sbr.rel (0) target = $region17
    $region16: #{tpu_custom_call.1} parent=1 // pred_region
      %s54 = ssub.s32 8192, 8192
      %55 = vsyncadd [#allocation9], %s54
      %s56 = sshll.u32 [#allocation8], 4
      %s57 = int_to_ptr.vmem [resolvable:$true] %s56
      %62 = dma.hbm_to_vmem [thread:$0]  %s3, 8192, %s57, [#allocation9], 128, 128, 8
    $region17: #{tpu_custom_call.1} parent=1 // pred_fallthru
      _
    // Predicated region
    $region18: #{tpu_custom_call.1} parent=1 // pred_check
      _
    $region19: #{tpu_custom_call.1} parent=1 // pred_check_branch
      %64 = sbr.rel (0) target = $region21
    $region20: #{tpu_custom_call.1} parent=1 // pred_region
      %s66 = ssub.s32 32, 32
      %67 = vsyncadd [#allocation9], %s66
      %s69 = sshll.u32 [#allocation10], 4
      %s70 = int_to_ptr.vmem [resolvable:$true] %s69
      %72 = dma.hbm_to_vmem [thread:$0]  %s4, 32, %s70, [#allocation9]
    $region21: #{tpu_custom_call.1} parent=1 // pred_fallthru
      _
    // Predicated region
    $region22: #{tpu_custom_call.1} parent=1 // pred_check
      _
    $region23: #{tpu_custom_call.1} parent=1 // pred_check_branch
      %74 = sbr.rel (0) target = $region25
    $region24: #{tpu_custom_call.1} parent=1 // pred_region
      %s76 = ssub.s32 32, 32
      %77 = vsyncadd [#allocation12], %s76
      %s79 = sshll.u32 [#allocation11], 4
      %s80 = int_to_ptr.vmem [resolvable:$true] %s79
      %82 = dma.hbm_to_vmem [thread:$0]  %s5, 32, %s80, [#allocation12]
    $region25: #{tpu_custom_call.1} parent=1 // pred_fallthru
      _
    // Predicated region
    $region26: #{tpu_custom_call.1} parent=1 // pred_check
      _
    $region27: #{tpu_custom_call.1} parent=1 // pred_check_branch
      %84 = sbr.rel (0) target = $region29
    $region28: #{tpu_custom_call.1} parent=1 // pred_region
      %s86 = ssub.s32 32, 32
      %87 = vsyncadd [#allocation12], %s86
      %s89 = sshll.u32 [#allocation13], 4
      %s90 = int_to_ptr.vmem [resolvable:$true] %s89
      %92 = dma.hbm_to_vmem [thread:$0]  %s6, 32, %s90, [#allocation12]
    $region29: #{tpu_custom_call.1} parent=1 // pred_fallthru
      _
    // Predicated region
    $region30: #{tpu_custom_call.1} parent=1 // pred_check
      _
    $region31: #{tpu_custom_call.1} parent=1 // pred_check_branch
      %94 = sbr.rel (0) target = $region33
    $region32: #{tpu_custom_call.1} parent=1 // pred_region
      %95 = dma.done [#allocation3], 8192
    $region33: #{tpu_custom_call.1} parent=1 // pred_fallthru
      _
    // Predicated region
    $region34: #{tpu_custom_call.1} parent=1 // pred_check
      _
    $region35: #{tpu_custom_call.1} parent=1 // pred_check_branch
      %97 = sbr.rel (0) target = $region37
    $region36: #{tpu_custom_call.1} parent=1 // pred_region
      %98 = dma.done [#allocation6], 8192
    $region37: #{tpu_custom_call.1} parent=1 // pred_fallthru
      _
    // Predicated region
    $region38: #{tpu_custom_call.1} parent=1 // pred_check
      _
    $region39: #{tpu_custom_call.1} parent=1 // pred_check_branch
      %100 = sbr.rel (0) target = $region41
    $region40: #{tpu_custom_call.1} parent=1 // pred_region
      %101 = dma.done [#allocation6], 64
    $region41: #{tpu_custom_call.1} parent=1 // pred_fallthru
      _
    // Predicated region
    $region42: #{tpu_custom_call.1} parent=1 // pred_check
      _
    $region43: #{tpu_custom_call.1} parent=1 // pred_check_branch
      %103 = sbr.rel (0) target = $region45
    $region44: #{tpu_custom_call.1} parent=1 // pred_region
      %104 = dma.done [#allocation9], 8192
    $region45: #{tpu_custom_call.1} parent=1 // pred_fallthru
      _
    // Predicated region
    $region46: #{tpu_custom_call.1} parent=1 // pred_check
      _
    $region47: #{tpu_custom_call.1} parent=1 // pred_check_branch
      %106 = sbr.rel (0) target = $region49
    $region48: #{tpu_custom_call.1} parent=1 // pred_region
      %107 = dma.done [#allocation9], 32
    $region49: #{tpu_custom_call.1} parent=1 // pred_fallthru
      _
    // Predicated region
    $region50: #{tpu_custom_call.1} parent=1 // pred_check
      _
    $region51: #{tpu_custom_call.1} parent=1 // pred_check_branch
      %109 = sbr.rel (0) target = $region53
    $region52: #{tpu_custom_call.1} parent=1 // pred_region
      %110 = dma.done [#allocation12], 32
    $region53: #{tpu_custom_call.1} parent=1 // pred_fallthru
      _
    // Predicated region
    $region54: #{tpu_custom_call.1} parent=1 // pred_check
      _
    $region55: #{tpu_custom_call.1} parent=1 // pred_check_branch
      %112 = sbr.rel (0) target = $region57
    $region56: #{tpu_custom_call.1} parent=1 // pred_region
      %113 = dma.done [#allocation12], 32
    $region57: #{tpu_custom_call.1} parent=1 // pred_fallthru
      _
    %v114 = vld [vmem:[#allocation2] sm:$0xff]
    %v115 = vld [vmem:[#allocation2 + $0x8] sm:$0xff]
    %v116 = vld [vmem:[#allocation2 + $0x10] sm:$0xff]
    %v117 = vld [vmem:[#allocation2 + $0x18] sm:$0xff]
    %v118 = vld [vmem:[#allocation2 + $0x20] sm:$0xff]
    %v119 = vld [vmem:[#allocation2 + $0x28] sm:$0xff]
    %v120 = vld [vmem:[#allocation2 + $0x30] sm:$0xff]
    %v121 = vld [vmem:[#allocation2 + $0x38] sm:$0xff]
    %v122 = vld [vmem:[#allocation2 + $0x40] sm:$0xff]
    %v123 = vld [vmem:[#allocation2 + $0x48] sm:$0xff]
    %v124 = vld [vmem:[#allocation2 + $0x50] sm:$0xff]
    %v125 = vld [vmem:[#allocation2 + $0x58] sm:$0xff]
    %v126 = vld [vmem:[#allocation2 + $0x60] sm:$0xff]
    %v127 = vld [vmem:[#allocation2 + $0x68] sm:$0xff]
    %v128 = vld [vmem:[#allocation2 + $0x70] sm:$0xff]
    %v129 = vld [vmem:[#allocation2 + $0x78] sm:$0xff]
    %v130 = vld [vmem:[#allocation2 + $0x80] sm:$0xff]
    %v131 = vld [vmem:[#allocation2 + $0x88] sm:$0xff]
    %v132 = vld [vmem:[#allocation2 + $0x90] sm:$0xff]
    %v133 = vld [vmem:[#allocation2 + $0x98] sm:$0xff]
    %v134 = vld [vmem:[#allocation2 + $0xa0] sm:$0xff]
    %v135 = vld [vmem:[#allocation2 + $0xa8] sm:$0xff]
    %v136 = vld [vmem:[#allocation2 + $0xb0] sm:$0xff]
    %v137 = vld [vmem:[#allocation2 + $0xb8] sm:$0xff]
    %v138 = vld [vmem:[#allocation2 + $0xc0] sm:$0xff]
    %v139 = vld [vmem:[#allocation2 + $0xc8] sm:$0xff]
    %v140 = vld [vmem:[#allocation2 + $0xd0] sm:$0xff]
    %v141 = vld [vmem:[#allocation2 + $0xd8] sm:$0xff]
    %v142 = vld [vmem:[#allocation2 + $0xe0] sm:$0xff]
    %v143 = vld [vmem:[#allocation2 + $0xe8] sm:$0xff]
    %v144 = vld [vmem:[#allocation2 + $0xf0] sm:$0xff]
    %v145 = vld [vmem:[#allocation2 + $0xf8] sm:$0xff]
    %v146 = vld [vmem:[#allocation2 + $0x100] sm:$0xff]
    %v147 = vld [vmem:[#allocation2 + $0x108] sm:$0xff]
    %v148 = vld [vmem:[#allocation2 + $0x110] sm:$0xff]
    %v149 = vld [vmem:[#allocation2 + $0x118] sm:$0xff]
    %v150 = vld [vmem:[#allocation2 + $0x120] sm:$0xff]
    %v151 = vld [vmem:[#allocation2 + $0x128] sm:$0xff]
    %v152 = vld [vmem:[#allocation2 + $0x130] sm:$0xff]
    %v153 = vld [vmem:[#allocation2 + $0x138] sm:$0xff]
    %v154 = vld [vmem:[#allocation2 + $0x140] sm:$0xff]
    %v155 = vld [vmem:[#allocation2 + $0x148] sm:$0xff]
    %v156 = vld [vmem:[#allocation2 + $0x150] sm:$0xff]
    %v157 = vld [vmem:[#allocation2 + $0x158] sm:$0xff]
    %v158 = vld [vmem:[#allocation2 + $0x160] sm:$0xff]
    %v159 = vld [vmem:[#allocation2 + $0x168] sm:$0xff]
    %v160 = vld [vmem:[#allocation2 + $0x170] sm:$0xff]
    %v161 = vld [vmem:[#allocation2 + $0x178] sm:$0xff]
    %v162 = vld [vmem:[#allocation2 + $0x180] sm:$0xff]
    %v163 = vld [vmem:[#allocation2 + $0x188] sm:$0xff]
    %v164 = vld [vmem:[#allocation2 + $0x190] sm:$0xff]
    %v165 = vld [vmem:[#allocation2 + $0x198] sm:$0xff]
    %v166 = vld [vmem:[#allocation2 + $0x1a0] sm:$0xff]
    %v167 = vld [vmem:[#allocation2 + $0x1a8] sm:$0xff]
    %v168 = vld [vmem:[#allocation2 + $0x1b0] sm:$0xff]
    %v169 = vld [vmem:[#allocation2 + $0x1b8] sm:$0xff]
    %v170 = vld [vmem:[#allocation2 + $0x1c0] sm:$0xff]
    %v171 = vld [vmem:[#allocation2 + $0x1c8] sm:$0xff]
    %v172 = vld [vmem:[#allocation2 + $0x1d0] sm:$0xff]
    %v173 = vld [vmem:[#allocation2 + $0x1d8] sm:$0xff]
    %v174 = vld [vmem:[#allocation2 + $0x1e0] sm:$0xff]
    %v175 = vld [vmem:[#allocation2 + $0x1e8] sm:$0xff]
    %v176 = vld [vmem:[#allocation2 + $0x1f0] sm:$0xff]
    %v177 = vld [vmem:[#allocation2 + $0x1f8] sm:$0xff]
    %v178 = vpack.c.bf16 %v116, %v114
    %v179 = vpack.c.bf16 %v117, %v115
    %v180 = vpack.c.bf16 %v120, %v118
    %v181 = vpack.c.bf16 %v121, %v119
    %v182 = vpack.c.bf16 %v124, %v122
    %v183 = vpack.c.bf16 %v125, %v123
    %v184 = vpack.c.bf16 %v128, %v126
    %v185 = vpack.c.bf16 %v129, %v127
    %v186 = vpack.c.bf16 %v132, %v130
    %v187 = vpack.c.bf16 %v133, %v131
    %v188 = vpack.c.bf16 %v136, %v134
    %v189 = vpack.c.bf16 %v137, %v135
    %v190 = vpack.c.bf16 %v140, %v138
    %v191 = vpack.c.bf16 %v141, %v139
    %v192 = vpack.c.bf16 %v144, %v142
    %v193 = vpack.c.bf16 %v145, %v143
    %v194 = vpack.c.bf16 %v148, %v146
    %v195 = vpack.c.bf16 %v149, %v147
    %v196 = vpack.c.bf16 %v152, %v150
    %v197 = vpack.c.bf16 %v153, %v151
    %v198 = vpack.c.bf16 %v156, %v154
    %v199 = vpack.c.bf16 %v157, %v155
    %v200 = vpack.c.bf16 %v160, %v158
    %v201 = vpack.c.bf16 %v161, %v159
    %v202 = vpack.c.bf16 %v164, %v162
    %v203 = vpack.c.bf16 %v165, %v163
    %v204 = vpack.c.bf16 %v168, %v166
    %v205 = vpack.c.bf16 %v169, %v167
    %v206 = vpack.c.bf16 %v172, %v170
    %v207 = vpack.c.bf16 %v173, %v171
    %v208 = vpack.c.bf16 %v176, %v174
    %v209 = vpack.c.bf16 %v177, %v175
    %v210 = vld [vmem:[#allocation5] sm:$0xff]
    %v211 = vld [vmem:[#allocation5 + $0x8] sm:$0xff]
    %v212 = vld [vmem:[#allocation5 + $0x10] sm:$0xff]
    %v213 = vld [vmem:[#allocation5 + $0x18] sm:$0xff]
    %v214 = vld [vmem:[#allocation5 + $0x20] sm:$0xff]
    %v215 = vld [vmem:[#allocation5 + $0x28] sm:$0xff]
    %v216 = vld [vmem:[#allocation5 + $0x30] sm:$0xff]
    %v217 = vld [vmem:[#allocation5 + $0x38] sm:$0xff]
    %v218 = vld [vmem:[#allocation5 + $0x40] sm:$0xff]
    %v219 = vld [vmem:[#allocation5 + $0x48] sm:$0xff]
    %v220 = vld [vmem:[#allocation5 + $0x50] sm:$0xff]
    %v221 = vld [vmem:[#allocation5 + $0x58] sm:$0xff]
    %v222 = vld [vmem:[#allocation5 + $0x60] sm:$0xff]
    %v223 = vld [vmem:[#allocation5 + $0x68] sm:$0xff]
    %v224 = vld [vmem:[#allocation5 + $0x70] sm:$0xff]
    %v225 = vld [vmem:[#allocation5 + $0x78] sm:$0xff]
    %v226 = vld [vmem:[#allocation5 + $0x80] sm:$0xff]
    %v227 = vld [vmem:[#allocation5 + $0x88] sm:$0xff]
    %v228 = vld [vmem:[#allocation5 + $0x90] sm:$0xff]
    %v229 = vld [vmem:[#allocation5 + $0x98] sm:$0xff]
    %v230 = vld [vmem:[#allocation5 + $0xa0] sm:$0xff]
    %v231 = vld [vmem:[#allocation5 + $0xa8] sm:$0xff]
    %v232 = vld [vmem:[#allocation5 + $0xb0] sm:$0xff]
    %v233 = vld [vmem:[#allocation5 + $0xb8] sm:$0xff]
    %v234 = vld [vmem:[#allocation5 + $0xc0] sm:$0xff]
    %v235 = vld [vmem:[#allocation5 + $0xc8] sm:$0xff]
    %v236 = vld [vmem:[#allocation5 + $0xd0] sm:$0xff]
    %v237 = vld [vmem:[#allocation5 + $0xd8] sm:$0xff]
    %v238 = vld [vmem:[#allocation5 + $0xe0] sm:$0xff]
    %v239 = vld [vmem:[#allocation5 + $0xe8] sm:$0xff]
    %v240 = vld [vmem:[#allocation5 + $0xf0] sm:$0xff]
    %v241 = vld [vmem:[#allocation5 + $0xf8] sm:$0xff]
    %v242 = vld [vmem:[#allocation5 + $0x100] sm:$0xff]
    %v243 = vld [vmem:[#allocation5 + $0x108] sm:$0xff]
    %v244 = vld [vmem:[#allocation5 + $0x110] sm:$0xff]
    %v245 = vld [vmem:[#allocation5 + $0x118] sm:$0xff]
    %v246 = vld [vmem:[#allocation5 + $0x120] sm:$0xff]
    %v247 = vld [vmem:[#allocation5 + $0x128] sm:$0xff]
    %v248 = vld [vmem:[#allocation5 + $0x130] sm:$0xff]
    %v249 = vld [vmem:[#allocation5 + $0x138] sm:$0xff]
    %v250 = vld [vmem:[#allocation5 + $0x140] sm:$0xff]
    %v251 = vld [vmem:[#allocation5 + $0x148] sm:$0xff]
    %v252 = vld [vmem:[#allocation5 + $0x150] sm:$0xff]
    %v253 = vld [vmem:[#allocation5 + $0x158] sm:$0xff]
    %v254 = vld [vmem:[#allocation5 + $0x160] sm:$0xff]
    %v255 = vld [vmem:[#allocation5 + $0x168] sm:$0xff]
    %v256 = vld [vmem:[#allocation5 + $0x170] sm:$0xff]
    %v257 = vld [vmem:[#allocation5 + $0x178] sm:$0xff]
    %v258 = vld [vmem:[#allocation5 + $0x180] sm:$0xff]
    %v259 = vld [vmem:[#allocation5 + $0x188] sm:$0xff]
    %v260 = vld [vmem:[#allocation5 + $0x190] sm:$0xff]
    %v261 = vld [vmem:[#allocation5 + $0x198] sm:$0xff]
    %v262 = vld [vmem:[#allocation5 + $0x1a0] sm:$0xff]
    %v263 = vld [vmem:[#allocation5 + $0x1a8] sm:$0xff]
    %v264 = vld [vmem:[#allocation5 + $0x1b0] sm:$0xff]
    %v265 = vld [vmem:[#allocation5 + $0x1b8] sm:$0xff]
    %v266 = vld [vmem:[#allocation5 + $0x1c0] sm:$0xff]
    %v267 = vld [vmem:[#allocation5 + $0x1c8] sm:$0xff]
    %v268 = vld [vmem:[#allocation5 + $0x1d0] sm:$0xff]
    %v269 = vld [vmem:[#allocation5 + $0x1d8] sm:$0xff]
    %v270 = vld [vmem:[#allocation5 + $0x1e0] sm:$0xff]
    %v271 = vld [vmem:[#allocation5 + $0x1e8] sm:$0xff]
    %v272 = vld [vmem:[#allocation5 + $0x1f0] sm:$0xff]
    %v273 = vld [vmem:[#allocation5 + $0x1f8] sm:$0xff]
    %v274 = vld [vmem:[#allocation7] sm:$0xf]
    %v276 = vlaneseq
    %v277 = vshrl.u32 %v276, 7
    %v278 = vsub.s32 0, %v277
    %v279 = vrot.slane %v274, %v278
    %v280 = vlaneseq
    %v281 = vshrl.u32 %v280, 7
    %v282 = vsub.s32 1, %v281
    %v283 = vrot.slane %v274, %v282
    %v284 = vlaneseq
    %v285 = vshrl.u32 %v284, 7
    %v286 = vsub.s32 2, %v285
    %v287 = vrot.slane %v274, %v286
    %v288 = vlaneseq
    %v289 = vshrl.u32 %v288, 7
    %v290 = vsub.s32 3, %v289
    %v291 = vrot.slane %v274, %v290
    %v360 = vunpack.c.l.b16 %v210
    %v361 = vunpack.c.h.b16 %v210
    %v362 = vunpack.c.l.b16 %v211
    %v363 = vunpack.c.h.b16 %v211
    %v364 = vunpack.c.l.b16 %v212
    %v365 = vunpack.c.h.b16 %v212
    %v366 = vunpack.c.l.b16 %v213
    %v367 = vunpack.c.h.b16 %v213
    %v368 = vunpack.c.l.b16 %v214
    %v369 = vunpack.c.h.b16 %v214
    %v370 = vunpack.c.l.b16 %v215
    %v371 = vunpack.c.h.b16 %v215
    %v372 = vunpack.c.l.b16 %v216
    %v373 = vunpack.c.h.b16 %v216
    %v374 = vunpack.c.l.b16 %v217
    %v375 = vunpack.c.h.b16 %v217
    %v376 = vunpack.c.l.b16 %v218
    %v377 = vunpack.c.h.b16 %v218
    %v378 = vunpack.c.l.b16 %v219
    %v379 = vunpack.c.h.b16 %v219
    %v380 = vunpack.c.l.b16 %v220
    %v381 = vunpack.c.h.b16 %v220
    %v382 = vunpack.c.l.b16 %v221
    %v383 = vunpack.c.h.b16 %v221
    %v384 = vunpack.c.l.b16 %v222
    %v385 = vunpack.c.h.b16 %v222
    %v386 = vunpack.c.l.b16 %v223
    %v387 = vunpack.c.h.b16 %v223
    %v388 = vunpack.c.l.b16 %v224
    %v389 = vunpack.c.h.b16 %v224
    %v390 = vunpack.c.l.b16 %v225
    %v391 = vunpack.c.h.b16 %v225
    %v392 = vunpack.c.l.b16 %v226
    %v393 = vunpack.c.h.b16 %v226
    %v394 = vunpack.c.l.b16 %v227
    %v395 = vunpack.c.h.b16 %v227
    %v396 = vunpack.c.l.b16 %v228
    %v397 = vunpack.c.h.b16 %v228
    %v398 = vunpack.c.l.b16 %v229
    %v399 = vunpack.c.h.b16 %v229
    %v400 = vunpack.c.l.b16 %v230
    %v401 = vunpack.c.h.b16 %v230
    %v402 = vunpack.c.l.b16 %v231
    %v403 = vunpack.c.h.b16 %v231
    %v404 = vunpack.c.l.b16 %v232
    %v405 = vunpack.c.h.b16 %v232
    %v406 = vunpack.c.l.b16 %v233
    %v407 = vunpack.c.h.b16 %v233
    %v408 = vunpack.c.l.b16 %v234
    %v409 = vunpack.c.h.b16 %v234
    %v410 = vunpack.c.l.b16 %v235
    %v411 = vunpack.c.h.b16 %v235
    %v412 = vunpack.c.l.b16 %v236
    %v413 = vunpack.c.h.b16 %v236
    %v414 = vunpack.c.l.b16 %v237
    %v415 = vunpack.c.h.b16 %v237
    %v416 = vunpack.c.l.b16 %v238
    %v417 = vunpack.c.h.b16 %v238
    %v418 = vunpack.c.l.b16 %v239
    %v419 = vunpack.c.h.b16 %v239
    %v420 = vunpack.c.l.b16 %v240
    %v421 = vunpack.c.h.b16 %v240
    %v422 = vunpack.c.l.b16 %v241
    %v423 = vunpack.c.h.b16 %v241
    %v424 = vunpack.c.l.b16 %v242
    %v425 = vunpack.c.h.b16 %v242
    %v426 = vunpack.c.l.b16 %v243
    %v427 = vunpack.c.h.b16 %v243
    %v428 = vunpack.c.l.b16 %v244
    %v429 = vunpack.c.h.b16 %v244
    %v430 = vunpack.c.l.b16 %v245
    %v431 = vunpack.c.h.b16 %v245
    %v432 = vunpack.c.l.b16 %v246
    %v433 = vunpack.c.h.b16 %v246
    %v434 = vunpack.c.l.b16 %v247
    %v435 = vunpack.c.h.b16 %v247
    %v436 = vunpack.c.l.b16 %v248
    %v437 = vunpack.c.h.b16 %v248
    %v438 = vunpack.c.l.b16 %v249
    %v439 = vunpack.c.h.b16 %v249
    %v440 = vunpack.c.l.b16 %v250
    %v441 = vunpack.c.h.b16 %v250
    %v442 = vunpack.c.l.b16 %v251
    %v443 = vunpack.c.h.b16 %v251
    %v444 = vunpack.c.l.b16 %v252
    %v445 = vunpack.c.h.b16 %v252
    %v446 = vunpack.c.l.b16 %v253
    %v447 = vunpack.c.h.b16 %v253
    %v448 = vunpack.c.l.b16 %v254
    %v449 = vunpack.c.h.b16 %v254
    %v450 = vunpack.c.l.b16 %v255
    %v451 = vunpack.c.h.b16 %v255
    %v452 = vunpack.c.l.b16 %v256
    %v453 = vunpack.c.h.b16 %v256
    %v454 = vunpack.c.l.b16 %v257
    %v455 = vunpack.c.h.b16 %v257
    %v456 = vunpack.c.l.b16 %v258
    %v457 = vunpack.c.h.b16 %v258
    %v458 = vunpack.c.l.b16 %v259
    %v459 = vunpack.c.h.b16 %v259
    %v460 = vunpack.c.l.b16 %v260
    %v461 = vunpack.c.h.b16 %v260
    %v462 = vunpack.c.l.b16 %v261
    %v463 = vunpack.c.h.b16 %v261
    %v464 = vunpack.c.l.b16 %v262
    %v465 = vunpack.c.h.b16 %v262
    %v466 = vunpack.c.l.b16 %v263
    %v467 = vunpack.c.h.b16 %v263
    %v468 = vunpack.c.l.b16 %v264
    %v469 = vunpack.c.h.b16 %v264
    %v470 = vunpack.c.l.b16 %v265
    %v471 = vunpack.c.h.b16 %v265
    %v472 = vunpack.c.l.b16 %v266
    %v473 = vunpack.c.h.b16 %v266
    %v474 = vunpack.c.l.b16 %v267
    %v475 = vunpack.c.h.b16 %v267
    %v476 = vunpack.c.l.b16 %v268
    %v477 = vunpack.c.h.b16 %v268
    %v478 = vunpack.c.l.b16 %v269
    %v479 = vunpack.c.h.b16 %v269
    %v480 = vunpack.c.l.b16 %v270
    %v481 = vunpack.c.h.b16 %v270
    %v482 = vunpack.c.l.b16 %v271
    %v483 = vunpack.c.h.b16 %v271
    %v484 = vunpack.c.l.b16 %v272
    %v485 = vunpack.c.h.b16 %v272
    %v486 = vunpack.c.l.b16 %v273
    %v487 = vunpack.c.h.b16 %v273
    %v488 = vpack.c.b16 %v364, %v360
    %v489 = vpack.c.b16 %v365, %v361
    %v490 = vpack.c.b16 %v366, %v362
    %v491 = vpack.c.b16 %v367, %v363
    %v492 = vpack.c.b16 %v372, %v368
    %v493 = vpack.c.b16 %v373, %v369
    %v494 = vpack.c.b16 %v374, %v370
    %v495 = vpack.c.b16 %v375, %v371
    %v496 = vpack.c.b16 %v380, %v376
    %v497 = vpack.c.b16 %v381, %v377
    %v498 = vpack.c.b16 %v382, %v378
    %v499 = vpack.c.b16 %v383, %v379
    %v500 = vpack.c.b16 %v388, %v384
    %v501 = vpack.c.b16 %v389, %v385
    %v502 = vpack.c.b16 %v390, %v386
    %v503 = vpack.c.b16 %v391, %v387
    %v504 = vpack.c.b16 %v396, %v392
    %v505 = vpack.c.b16 %v397, %v393
    %v506 = vpack.c.b16 %v398, %v394
    %v507 = vpack.c.b16 %v399, %v395
    %v508 = vpack.c.b16 %v404, %v400
    %v509 = vpack.c.b16 %v405, %v401
    %v510 = vpack.c.b16 %v406, %v402
    %v511 = vpack.c.b16 %v407, %v403
    %v512 = vpack.c.b16 %v412, %v408
    %v513 = vpack.c.b16 %v413, %v409
    %v514 = vpack.c.b16 %v414, %v410
    %v515 = vpack.c.b16 %v415, %v411
    %v516 = vpack.c.b16 %v420, %v416
    %v517 = vpack.c.b16 %v421, %v417
    %v518 = vpack.c.b16 %v422, %v418
    %v519 = vpack.c.b16 %v423, %v419
    %v520 = vpack.c.b16 %v428, %v424
    %v521 = vpack.c.b16 %v429, %v425
    %v522 = vpack.c.b16 %v430, %v426
    %v523 = vpack.c.b16 %v431, %v427
    %v524 = vpack.c.b16 %v436, %v432
    %v525 = vpack.c.b16 %v437, %v433
    %v526 = vpack.c.b16 %v438, %v434
    %v527 = vpack.c.b16 %v439, %v435
    %v528 = vpack.c.b16 %v444, %v440
    %v529 = vpack.c.b16 %v445, %v441
    %v530 = vpack.c.b16 %v446, %v442
    %v531 = vpack.c.b16 %v447, %v443
    %v532 = vpack.c.b16 %v452, %v448
    %v533 = vpack.c.b16 %v453, %v449
    %v534 = vpack.c.b16 %v454, %v450
    %v535 = vpack.c.b16 %v455, %v451
    %v536 = vpack.c.b16 %v460, %v456
    %v537 = vpack.c.b16 %v461, %v457
    %v538 = vpack.c.b16 %v462, %v458
    %v539 = vpack.c.b16 %v463, %v459
    %v540 = vpack.c.b16 %v468, %v464
    %v541 = vpack.c.b16 %v469, %v465
    %v542 = vpack.c.b16 %v470, %v466
    %v543 = vpack.c.b16 %v471, %v467
    %v544 = vpack.c.b16 %v476, %v472
    %v545 = vpack.c.b16 %v477, %v473
    %v546 = vpack.c.b16 %v478, %v474
    %v547 = vpack.c.b16 %v479, %v475
    %v548 = vpack.c.b16 %v484, %v480
    %v549 = vpack.c.b16 %v485, %v481
    %v550 = vpack.c.b16 %v486, %v482
    %v551 = vpack.c.b16 %v487, %v483
    %616 = vmatprep.subr.bf16.mxu0 %v489
    %617 = vmatpush1.bf16.msra.mxu0 %v488
    %618 = vmatprep.subr.bf16.mxu0 %v493
    %619 = vmatpush1.bf16.msra.mxu0 %v492
    %620 = vmatprep.subr.bf16.mxu0 %v497
    %621 = vmatpush1.bf16.msra.mxu0 %v496
    %622 = vmatprep.subr.bf16.mxu0 %v501
    %623 = vmatpush1.bf16.msra.mxu0 %v500
    %624 = vmatprep.subr.bf16.mxu0 %v505
    %625 = vmatpush1.bf16.msra.mxu0 %v504
    %626 = vmatprep.subr.bf16.mxu0 %v509
    %627 = vmatpush1.bf16.msra.mxu0 %v508
    %628 = vmatprep.subr.bf16.mxu0 %v513
    %629 = vmatpush1.bf16.msra.mxu0 %v512
    %630 = vmatprep.subr.bf16.mxu0 %v517
    %631 = vmatpush1.bf16.msra.mxu0 %v516
    %632 = vmatprep.subr.bf16.mxu0 %v521
    %633 = vmatpush1.bf16.msra.mxu0 %v520
    %634 = vmatprep.subr.bf16.mxu0 %v525
    %635 = vmatpush1.bf16.msra.mxu0 %v524
    %636 = vmatprep.subr.bf16.mxu0 %v529
    %637 = vmatpush1.bf16.msra.mxu0 %v528
    %638 = vmatprep.subr.bf16.mxu0 %v533
    %639 = vmatpush1.bf16.msra.mxu0 %v532
    %640 = vmatprep.subr.bf16.mxu0 %v537
    %641 = vmatpush1.bf16.msra.mxu0 %v536
    %642 = vmatprep.subr.bf16.mxu0 %v541
    %643 = vmatpush1.bf16.msra.mxu0 %v540
    %644 = vmatprep.subr.bf16.mxu0 %v545
    %645 = vmatpush1.bf16.msra.mxu0 %v544
    %646 = vmatprep.subr.bf16.mxu0 %v549
    %647 = vmatpush1.bf16.msra.mxu0 %v548
    %648 = vmatprep.mubr.bf16.mxu0 %v179
    %649 = vmatmul.mubr.bf16.gmra.mrb[0].mxu0 %v178
    %v650 = vpop.f32.mrb[0].mxu0
    %v651 = vadd.f32 %v279, %v650
    %v652 = vpop.f32.mrb[0].mxu0
    %v653 = vadd.f32 %v283, %v652
    %v654 = vpop.f32.mrb[0].mxu0
    %v655 = vadd.f32 %v279, %v654
    %v656 = vpop.f32.mrb[0].mxu0
    %v657 = vadd.f32 %v283, %v656
    %658 = vmatprep.mubr.bf16.mxu0 %v181
    %659 = vmatmul.mubr.bf16.gmra.mrb[0].mxu0 %v180
    %v660 = vpop.f32.mrb[0].mxu0
    %v661 = vadd.f32 %v279, %v660
    %v662 = vpop.f32.mrb[0].mxu0
    %v663 = vadd.f32 %v283, %v662
    %v664 = vpop.f32.mrb[0].mxu0
    %v665 = vadd.f32 %v279, %v664
    %v666 = vpop.f32.mrb[0].mxu0
    %v667 = vadd.f32 %v283, %v666
    %668 = vmatprep.mubr.bf16.mxu0 %v183
    %669 = vmatmul.mubr.bf16.gmra.mrb[0].mxu0 %v182
    %v670 = vpop.f32.mrb[0].mxu0
    %v671 = vadd.f32 %v279, %v670
    %v672 = vpop.f32.mrb[0].mxu0
    %v673 = vadd.f32 %v283, %v672
    %v674 = vpop.f32.mrb[0].mxu0
    %v675 = vadd.f32 %v279, %v674
    %v676 = vpop.f32.mrb[0].mxu0
    %v677 = vadd.f32 %v283, %v676
    %678 = vmatprep.mubr.bf16.mxu0 %v185
    %679 = vmatmul.mubr.bf16.gmra.mrb[0].mxu0 %v184
    %v680 = vpop.f32.mrb[0].mxu0
    %v681 = vadd.f32 %v279, %v680
    %v682 = vpop.f32.mrb[0].mxu0
    %v683 = vadd.f32 %v283, %v682
    %v684 = vpop.f32.mrb[0].mxu0
    %v685 = vadd.f32 %v279, %v684
    %v686 = vpop.f32.mrb[0].mxu0
    %v687 = vadd.f32 %v283, %v686
    %688 = vmatprep.mubr.bf16.mxu0 %v187
    %689 = vmatmul.mubr.bf16.gmra.mrb[0].mxu0 %v186
    %v690 = vpop.f32.mrb[0].mxu0
    %v691 = vadd.f32 %v279, %v690
    %v692 = vpop.f32.mrb[0].mxu0
    %v693 = vadd.f32 %v283, %v692
    %v694 = vpop.f32.mrb[0].mxu0
    %v695 = vadd.f32 %v279, %v694
    %v696 = vpop.f32.mrb[0].mxu0
    %v697 = vadd.f32 %v283, %v696
    %698 = vmatprep.mubr.bf16.mxu0 %v189
    %699 = vmatmul.mubr.bf16.gmra.mrb[0].mxu0 %v188
    %v700 = vpop.f32.mrb[0].mxu0
    %v701 = vadd.f32 %v279, %v700
    %v702 = vpop.f32.mrb[0].mxu0
    %v703 = vadd.f32 %v283, %v702
    %v704 = vpop.f32.mrb[0].mxu0
    %v705 = vadd.f32 %v279, %v704
    %v706 = vpop.f32.mrb[0].mxu0
    %v707 = vadd.f32 %v283, %v706
    %708 = vmatprep.mubr.bf16.mxu0 %v191
    %709 = vmatmul.mubr.bf16.gmra.mrb[0].mxu0 %v190
    %v710 = vpop.f32.mrb[0].mxu0
    %v711 = vadd.f32 %v279, %v710
    %v712 = vpop.f32.mrb[0].mxu0
    %v713 = vadd.f32 %v283, %v712
    %v714 = vpop.f32.mrb[0].mxu0
    %v715 = vadd.f32 %v279, %v714
    %v716 = vpop.f32.mrb[0].mxu0
    %v717 = vadd.f32 %v283, %v716
    %718 = vmatprep.mubr.bf16.mxu0 %v193
    %719 = vmatmul.mubr.bf16.gmra.mrb[0].mxu0 %v192
    %v720 = vpop.f32.mrb[0].mxu0
    %v721 = vadd.f32 %v279, %v720
    %v722 = vpop.f32.mrb[0].mxu0
    %v723 = vadd.f32 %v283, %v722
    %v724 = vpop.f32.mrb[0].mxu0
    %v725 = vadd.f32 %v279, %v724
    %v726 = vpop.f32.mrb[0].mxu0
    %v727 = vadd.f32 %v283, %v726
    %728 = vmatprep.mubr.bf16.mxu0 %v195
    %729 = vmatmul.mubr.bf16.gmra.mrb[0].mxu0 %v194
    %v730 = vpop.f32.mrb[0].mxu0
    %v731 = vadd.f32 %v279, %v730
    %v732 = vpop.f32.mrb[0].mxu0
    %v733 = vadd.f32 %v283, %v732
    %v734 = vpop.f32.mrb[0].mxu0
    %v735 = vadd.f32 %v279, %v734
    %v736 = vpop.f32.mrb[0].mxu0
    %v737 = vadd.f32 %v283, %v736
    %738 = vmatprep.mubr.bf16.mxu0 %v197
    %739 = vmatmul.mubr.bf16.gmra.mrb[0].mxu0 %v196
    %v740 = vpop.f32.mrb[0].mxu0
    %v741 = vadd.f32 %v279, %v740
    %v742 = vpop.f32.mrb[0].mxu0
    %v743 = vadd.f32 %v283, %v742
    %v744 = vpop.f32.mrb[0].mxu0
    %v745 = vadd.f32 %v279, %v744
    %v746 = vpop.f32.mrb[0].mxu0
    %v747 = vadd.f32 %v283, %v746
    %748 = vmatprep.mubr.bf16.mxu0 %v199
    %749 = vmatmul.mubr.bf16.gmra.mrb[0].mxu0 %v198
    %v750 = vpop.f32.mrb[0].mxu0
    %v751 = vadd.f32 %v279, %v750
    %v752 = vpop.f32.mrb[0].mxu0
    %v753 = vadd.f32 %v283, %v752
    %v754 = vpop.f32.mrb[0].mxu0
    %v755 = vadd.f32 %v279, %v754
    %v756 = vpop.f32.mrb[0].mxu0
    %v757 = vadd.f32 %v283, %v756
    %758 = vmatprep.mubr.bf16.mxu0 %v201
    %759 = vmatmul.mubr.bf16.gmra.mrb[0].mxu0 %v200
    %v760 = vpop.f32.mrb[0].mxu0
    %v761 = vadd.f32 %v279, %v760
    %v762 = vpop.f32.mrb[0].mxu0
    %v763 = vadd.f32 %v283, %v762
    %v764 = vpop.f32.mrb[0].mxu0
    %v765 = vadd.f32 %v279, %v764
    %v766 = vpop.f32.mrb[0].mxu0
    %v767 = vadd.f32 %v283, %v766
    %768 = vmatprep.mubr.bf16.mxu0 %v203
    %769 = vmatmul.mubr.bf16.gmra.mrb[0].mxu0 %v202
    %v770 = vpop.f32.mrb[0].mxu0
    %v771 = vadd.f32 %v279, %v770
    %v772 = vpop.f32.mrb[0].mxu0
    %v773 = vadd.f32 %v283, %v772
    %v774 = vpop.f32.mrb[0].mxu0
    %v775 = vadd.f32 %v279, %v774
    %v776 = vpop.f32.mrb[0].mxu0
    %v777 = vadd.f32 %v283, %v776
    %778 = vmatprep.mubr.bf16.mxu0 %v205
    %779 = vmatmul.mubr.bf16.gmra.mrb[0].mxu0 %v204
    %v780 = vpop.f32.mrb[0].mxu0
    %v781 = vadd.f32 %v279, %v780
    %v782 = vpop.f32.mrb[0].mxu0
    %v783 = vadd.f32 %v283, %v782
    %v784 = vpop.f32.mrb[0].mxu0
    %v785 = vadd.f32 %v279, %v784
    %v786 = vpop.f32.mrb[0].mxu0
    %v787 = vadd.f32 %v283, %v786
    %788 = vmatprep.mubr.bf16.mxu0 %v207
    %789 = vmatmul.mubr.bf16.gmra.mrb[0].mxu0 %v206
    %v790 = vpop.f32.mrb[0].mxu0
    %v791 = vadd.f32 %v279, %v790
    %v792 = vpop.f32.mrb[0].mxu0
    %v793 = vadd.f32 %v283, %v792
    %v794 = vpop.f32.mrb[0].mxu0
    %v795 = vadd.f32 %v279, %v794
    %v796 = vpop.f32.mrb[0].mxu0
    %v797 = vadd.f32 %v283, %v796
    %798 = vmatprep.mubr.bf16.mxu0 %v209
    %799 = vmatmul.mubr.bf16.gmra.mrb[0].mxu0 %v208
    %v800 = vpop.f32.mrb[0].mxu0
    %v801 = vadd.f32 %v279, %v800
    %v802 = vpop.f32.mrb[0].mxu0
    %v803 = vadd.f32 %v283, %v802
    %v804 = vpop.f32.mrb[0].mxu0
    %v805 = vadd.f32 %v279, %v804
    %v806 = vpop.f32.mrb[0].mxu0
    %v807 = vadd.f32 %v283, %v806
    %808 = vdwg.mxu0
    %809 = vmatprep.subr.bf16.mxu0 %v491
    %810 = vmatpush1.bf16.msra.mxu0 %v490
    %811 = vmatprep.subr.bf16.mxu0 %v495
    %812 = vmatpush1.bf16.msra.mxu0 %v494
    %813 = vmatprep.subr.bf16.mxu0 %v499
    %814 = vmatpush1.bf16.msra.mxu0 %v498
    %815 = vmatprep.subr.bf16.mxu0 %v503
    %816 = vmatpush1.bf16.msra.mxu0 %v502
    %817 = vmatprep.subr.bf16.mxu0 %v507
    %818 = vmatpush1.bf16.msra.mxu0 %v506
    %819 = vmatprep.subr.bf16.mxu0 %v511
    %820 = vmatpush1.bf16.msra.mxu0 %v510
    %821 = vmatprep.subr.bf16.mxu0 %v515
    %822 = vmatpush1.bf16.msra.mxu0 %v514
    %823 = vmatprep.subr.bf16.mxu0 %v519
    %824 = vmatpush1.bf16.msra.mxu0 %v518
    %825 = vmatprep.subr.bf16.mxu0 %v523
    %826 = vmatpush1.bf16.msra.mxu0 %v522
    %827 = vmatprep.subr.bf16.mxu0 %v527
    %828 = vmatpush1.bf16.msra.mxu0 %v526
    %829 = vmatprep.subr.bf16.mxu0 %v531
    %830 = vmatpush1.bf16.msra.mxu0 %v530
    %831 = vmatprep.subr.bf16.mxu0 %v535
    %832 = vmatpush1.bf16.msra.mxu0 %v534
    %833 = vmatprep.subr.bf16.mxu0 %v539
    %834 = vmatpush1.bf16.msra.mxu0 %v538
    %835 = vmatprep.subr.bf16.mxu0 %v543
    %836 = vmatpush1.bf16.msra.mxu0 %v542
    %837 = vmatprep.subr.bf16.mxu0 %v547
    %838 = vmatpush1.bf16.msra.mxu0 %v546
    %839 = vmatprep.subr.bf16.mxu0 %v551
    %840 = vmatpush1.bf16.msra.mxu0 %v550
    %841 = vmatprep.mubr.bf16.mxu0 %v179
    %842 = vmatmul.mubr.bf16.gmra.mrb[0].mxu0 %v178
    %v843 = vpop.f32.mrb[0].mxu0
    %v844 = vadd.f32 %v287, %v843
    %v845 = vpop.f32.mrb[0].mxu0
    %v846 = vadd.f32 %v291, %v845
    %v847 = vpop.f32.mrb[0].mxu0
    %v848 = vadd.f32 %v287, %v847
    %v849 = vpop.f32.mrb[0].mxu0
    %v850 = vadd.f32 %v291, %v849
    %851 = vmatprep.mubr.bf16.mxu0 %v181
    %852 = vmatmul.mubr.bf16.gmra.mrb[0].mxu0 %v180
    %v853 = vpop.f32.mrb[0].mxu0
    %v854 = vadd.f32 %v287, %v853
    %v855 = vpop.f32.mrb[0].mxu0
    %v856 = vadd.f32 %v291, %v855
    %v857 = vpop.f32.mrb[0].mxu0
    %v858 = vadd.f32 %v287, %v857
    %v859 = vpop.f32.mrb[0].mxu0
    %v860 = vadd.f32 %v291, %v859
    %861 = vmatprep.mubr.bf16.mxu0 %v183
    %862 = vmatmul.mubr.bf16.gmra.mrb[0].mxu0 %v182
    %v863 = vpop.f32.mrb[0].mxu0
    %v864 = vadd.f32 %v287, %v863
    %v865 = vpop.f32.mrb[0].mxu0
    %v866 = vadd.f32 %v291, %v865
    %v867 = vpop.f32.mrb[0].mxu0
    %v868 = vadd.f32 %v287, %v867
    %v869 = vpop.f32.mrb[0].mxu0
    %v870 = vadd.f32 %v291, %v869
    %871 = vmatprep.mubr.bf16.mxu0 %v185
    %872 = vmatmul.mubr.bf16.gmra.mrb[0].mxu0 %v184
    %v873 = vpop.f32.mrb[0].mxu0
    %v874 = vadd.f32 %v287, %v873
    %v875 = vpop.f32.mrb[0].mxu0
    %v876 = vadd.f32 %v291, %v875
    %v877 = vpop.f32.mrb[0].mxu0
    %v878 = vadd.f32 %v287, %v877
    %v879 = vpop.f32.mrb[0].mxu0
    %v880 = vadd.f32 %v291, %v879
    %881 = vmatprep.mubr.bf16.mxu0 %v187
    %882 = vmatmul.mubr.bf16.gmra.mrb[0].mxu0 %v186
    %v883 = vpop.f32.mrb[0].mxu0
    %v884 = vadd.f32 %v287, %v883
    %v885 = vpop.f32.mrb[0].mxu0
    %v886 = vadd.f32 %v291, %v885
    %v887 = vpop.f32.mrb[0].mxu0
    %v888 = vadd.f32 %v287, %v887
    %v889 = vpop.f32.mrb[0].mxu0
    %v890 = vadd.f32 %v291, %v889
    %891 = vmatprep.mubr.bf16.mxu0 %v189
    %892 = vmatmul.mubr.bf16.gmra.mrb[0].mxu0 %v188
    %v893 = vpop.f32.mrb[0].mxu0
    %v894 = vadd.f32 %v287, %v893
    %v895 = vpop.f32.mrb[0].mxu0
    %v896 = vadd.f32 %v291, %v895
    %v897 = vpop.f32.mrb[0].mxu0
    %v898 = vadd.f32 %v287, %v897
    %v899 = vpop.f32.mrb[0].mxu0
    %v900 = vadd.f32 %v291, %v899
    %901 = vmatprep.mubr.bf16.mxu0 %v191
    %902 = vmatmul.mubr.bf16.gmra.mrb[0].mxu0 %v190
    %v903 = vpop.f32.mrb[0].mxu0
    %v904 = vadd.f32 %v287, %v903
    %v905 = vpop.f32.mrb[0].mxu0
    %v906 = vadd.f32 %v291, %v905
    %v907 = vpop.f32.mrb[0].mxu0
    %v908 = vadd.f32 %v287, %v907
    %v909 = vpop.f32.mrb[0].mxu0
    %v910 = vadd.f32 %v291, %v909
    %911 = vmatprep.mubr.bf16.mxu0 %v193
    %912 = vmatmul.mubr.bf16.gmra.mrb[0].mxu0 %v192
    %v913 = vpop.f32.mrb[0].mxu0
    %v914 = vadd.f32 %v287, %v913
    %v915 = vpop.f32.mrb[0].mxu0
    %v916 = vadd.f32 %v291, %v915
    %v917 = vpop.f32.mrb[0].mxu0
    %v918 = vadd.f32 %v287, %v917
    %v919 = vpop.f32.mrb[0].mxu0
    %v920 = vadd.f32 %v291, %v919
    %921 = vmatprep.mubr.bf16.mxu0 %v195
    %922 = vmatmul.mubr.bf16.gmra.mrb[0].mxu0 %v194
    %v923 = vpop.f32.mrb[0].mxu0
    %v924 = vadd.f32 %v287, %v923
    %v925 = vpop.f32.mrb[0].mxu0
    %v926 = vadd.f32 %v291, %v925
    %v927 = vpop.f32.mrb[0].mxu0
    %v928 = vadd.f32 %v287, %v927
    %v929 = vpop.f32.mrb[0].mxu0
    %v930 = vadd.f32 %v291, %v929
    %931 = vmatprep.mubr.bf16.mxu0 %v197
    %932 = vmatmul.mubr.bf16.gmra.mrb[0].mxu0 %v196
    %v933 = vpop.f32.mrb[0].mxu0
    %v934 = vadd.f32 %v287, %v933
    %v935 = vpop.f32.mrb[0].mxu0
    %v936 = vadd.f32 %v291, %v935
    %v937 = vpop.f32.mrb[0].mxu0
    %v938 = vadd.f32 %v287, %v937
    %v939 = vpop.f32.mrb[0].mxu0
    %v940 = vadd.f32 %v291, %v939
    %941 = vmatprep.mubr.bf16.mxu0 %v199
    %942 = vmatmul.mubr.bf16.gmra.mrb[0].mxu0 %v198
    %v943 = vpop.f32.mrb[0].mxu0
    %v944 = vadd.f32 %v287, %v943
    %v945 = vpop.f32.mrb[0].mxu0
    %v946 = vadd.f32 %v291, %v945
    %v947 = vpop.f32.mrb[0].mxu0
    %v948 = vadd.f32 %v287, %v947
    %v949 = vpop.f32.mrb[0].mxu0
    %v950 = vadd.f32 %v291, %v949
    %951 = vmatprep.mubr.bf16.mxu0 %v201
    %952 = vmatmul.mubr.bf16.gmra.mrb[0].mxu0 %v200
    %v953 = vpop.f32.mrb[0].mxu0
    %v954 = vadd.f32 %v287, %v953
    %v955 = vpop.f32.mrb[0].mxu0
    %v956 = vadd.f32 %v291, %v955
    %v957 = vpop.f32.mrb[0].mxu0
    %v958 = vadd.f32 %v287, %v957
    %v959 = vpop.f32.mrb[0].mxu0
    %v960 = vadd.f32 %v291, %v959
    %961 = vmatprep.mubr.bf16.mxu0 %v203
    %962 = vmatmul.mubr.bf16.gmra.mrb[0].mxu0 %v202
    %v963 = vpop.f32.mrb[0].mxu0
    %v964 = vadd.f32 %v287, %v963
    %v965 = vpop.f32.mrb[0].mxu0
    %v966 = vadd.f32 %v291, %v965
    %v967 = vpop.f32.mrb[0].mxu0
    %v968 = vadd.f32 %v287, %v967
    %v969 = vpop.f32.mrb[0].mxu0
    %v970 = vadd.f32 %v291, %v969
    %971 = vmatprep.mubr.bf16.mxu0 %v205
    %972 = vmatmul.mubr.bf16.gmra.mrb[0].mxu0 %v204
    %v973 = vpop.f32.mrb[0].mxu0
    %v974 = vadd.f32 %v287, %v973
    %v975 = vpop.f32.mrb[0].mxu0
    %v976 = vadd.f32 %v291, %v975
    %v977 = vpop.f32.mrb[0].mxu0
    %v978 = vadd.f32 %v287, %v977
    %v979 = vpop.f32.mrb[0].mxu0
    %v980 = vadd.f32 %v291, %v979
    %981 = vmatprep.mubr.bf16.mxu0 %v207
    %982 = vmatmul.mubr.bf16.gmra.mrb[0].mxu0 %v206
    %v983 = vpop.f32.mrb[0].mxu0
    %v984 = vadd.f32 %v287, %v983
    %v985 = vpop.f32.mrb[0].mxu0
    %v986 = vadd.f32 %v291, %v985
    %v987 = vpop.f32.mrb[0].mxu0
    %v988 = vadd.f32 %v287, %v987
    %v989 = vpop.f32.mrb[0].mxu0
    %v990 = vadd.f32 %v291, %v989
    %991 = vmatprep.mubr.bf16.mxu0 %v209
    %992 = vmatmul.mubr.bf16.gmra.mrb[0].mxu0 %v208
    %v993 = vpop.f32.mrb[0].mxu0
    %v994 = vadd.f32 %v287, %v993
    %v995 = vpop.f32.mrb[0].mxu0
    %v996 = vadd.f32 %v291, %v995
    %v997 = vpop.f32.mrb[0].mxu0
    %v998 = vadd.f32 %v287, %v997
    %v999 = vpop.f32.mrb[0].mxu0
    %v1000 = vadd.f32 %v291, %v999
    %1001 = vdwg.mxu0
    %v1002 = vmax.f32 %v651, 0.0
    %v1003 = vmax.f32 %v653, 0.0
    %v1004 = vmax.f32 %v844, 0.0
    %v1005 = vmax.f32 %v846, 0.0
    %v1006 = vmax.f32 %v655, 0.0
    %v1007 = vmax.f32 %v657, 0.0
    %v1008 = vmax.f32 %v848, 0.0
    %v1009 = vmax.f32 %v850, 0.0
    %v1010 = vmax.f32 %v661, 0.0
    %v1011 = vmax.f32 %v663, 0.0
    %v1012 = vmax.f32 %v854, 0.0
    %v1013 = vmax.f32 %v856, 0.0
    %v1014 = vmax.f32 %v665, 0.0
    %v1015 = vmax.f32 %v667, 0.0
    %v1016 = vmax.f32 %v858, 0.0
    %v1017 = vmax.f32 %v860, 0.0
    %v1018 = vmax.f32 %v671, 0.0
    %v1019 = vmax.f32 %v673, 0.0
    %v1020 = vmax.f32 %v864, 0.0
    %v1021 = vmax.f32 %v866, 0.0
    %v1022 = vmax.f32 %v675, 0.0
    %v1023 = vmax.f32 %v677, 0.0
    %v1024 = vmax.f32 %v868, 0.0
    %v1025 = vmax.f32 %v870, 0.0
    %v1026 = vmax.f32 %v681, 0.0
    %v1027 = vmax.f32 %v683, 0.0
    %v1028 = vmax.f32 %v874, 0.0
    %v1029 = vmax.f32 %v876, 0.0
    %v1030 = vmax.f32 %v685, 0.0
    %v1031 = vmax.f32 %v687, 0.0
    %v1032 = vmax.f32 %v878, 0.0
    %v1033 = vmax.f32 %v880, 0.0
    %v1034 = vmax.f32 %v691, 0.0
    %v1035 = vmax.f32 %v693, 0.0
    %v1036 = vmax.f32 %v884, 0.0
    %v1037 = vmax.f32 %v886, 0.0
    %v1038 = vmax.f32 %v695, 0.0
    %v1039 = vmax.f32 %v697, 0.0
    %v1040 = vmax.f32 %v888, 0.0
    %v1041 = vmax.f32 %v890, 0.0
    %v1042 = vmax.f32 %v701, 0.0
    %v1043 = vmax.f32 %v703, 0.0
    %v1044 = vmax.f32 %v894, 0.0
    %v1045 = vmax.f32 %v896, 0.0
    %v1046 = vmax.f32 %v705, 0.0
    %v1047 = vmax.f32 %v707, 0.0
    %v1048 = vmax.f32 %v898, 0.0
    %v1049 = vmax.f32 %v900, 0.0
    %v1050 = vmax.f32 %v711, 0.0
    %v1051 = vmax.f32 %v713, 0.0
    %v1052 = vmax.f32 %v904, 0.0
    %v1053 = vmax.f32 %v906, 0.0
    %v1054 = vmax.f32 %v715, 0.0
    %v1055 = vmax.f32 %v717, 0.0
    %v1056 = vmax.f32 %v908, 0.0
    %v1057 = vmax.f32 %v910, 0.0
    %v1058 = vmax.f32 %v721, 0.0
    %v1059 = vmax.f32 %v723, 0.0
    %v1060 = vmax.f32 %v914, 0.0
    %v1061 = vmax.f32 %v916, 0.0
    %v1062 = vmax.f32 %v725, 0.0
    %v1063 = vmax.f32 %v727, 0.0
    %v1064 = vmax.f32 %v918, 0.0
    %v1065 = vmax.f32 %v920, 0.0
    %v1066 = vmax.f32 %v731, 0.0
    %v1067 = vmax.f32 %v733, 0.0
    %v1068 = vmax.f32 %v924, 0.0
    %v1069 = vmax.f32 %v926, 0.0
    %v1070 = vmax.f32 %v735, 0.0
    %v1071 = vmax.f32 %v737, 0.0
    %v1072 = vmax.f32 %v928, 0.0
    %v1073 = vmax.f32 %v930, 0.0
    %v1074 = vmax.f32 %v741, 0.0
    %v1075 = vmax.f32 %v743, 0.0
    %v1076 = vmax.f32 %v934, 0.0
    %v1077 = vmax.f32 %v936, 0.0
    %v1078 = vmax.f32 %v745, 0.0
    %v1079 = vmax.f32 %v747, 0.0
    %v1080 = vmax.f32 %v938, 0.0
    %v1081 = vmax.f32 %v940, 0.0
    %v1082 = vmax.f32 %v751, 0.0
    %v1083 = vmax.f32 %v753, 0.0
    %v1084 = vmax.f32 %v944, 0.0
    %v1085 = vmax.f32 %v946, 0.0
    %v1086 = vmax.f32 %v755, 0.0
    %v1087 = vmax.f32 %v757, 0.0
    %v1088 = vmax.f32 %v948, 0.0
    %v1089 = vmax.f32 %v950, 0.0
    %v1090 = vmax.f32 %v761, 0.0
    %v1091 = vmax.f32 %v763, 0.0
    %v1092 = vmax.f32 %v954, 0.0
    %v1093 = vmax.f32 %v956, 0.0
    %v1094 = vmax.f32 %v765, 0.0
    %v1095 = vmax.f32 %v767, 0.0
    %v1096 = vmax.f32 %v958, 0.0
    %v1097 = vmax.f32 %v960, 0.0
    %v1098 = vmax.f32 %v771, 0.0
    %v1099 = vmax.f32 %v773, 0.0
    %v1100 = vmax.f32 %v964, 0.0
    %v1101 = vmax.f32 %v966, 0.0
    %v1102 = vmax.f32 %v775, 0.0
    %v1103 = vmax.f32 %v777, 0.0
    %v1104 = vmax.f32 %v968, 0.0
    %v1105 = vmax.f32 %v970, 0.0
    %v1106 = vmax.f32 %v781, 0.0
    %v1107 = vmax.f32 %v783, 0.0
    %v1108 = vmax.f32 %v974, 0.0
    %v1109 = vmax.f32 %v976, 0.0
    %v1110 = vmax.f32 %v785, 0.0
    %v1111 = vmax.f32 %v787, 0.0
    %v1112 = vmax.f32 %v978, 0.0
    %v1113 = vmax.f32 %v980, 0.0
    %v1114 = vmax.f32 %v791, 0.0
    %v1115 = vmax.f32 %v793, 0.0
    %v1116 = vmax.f32 %v984, 0.0
    %v1117 = vmax.f32 %v986, 0.0
    %v1118 = vmax.f32 %v795, 0.0
    %v1119 = vmax.f32 %v797, 0.0
    %v1120 = vmax.f32 %v988, 0.0
    %v1121 = vmax.f32 %v990, 0.0
    %v1122 = vmax.f32 %v801, 0.0
    %v1123 = vmax.f32 %v803, 0.0
    %v1124 = vmax.f32 %v994, 0.0
    %v1125 = vmax.f32 %v996, 0.0
    %v1126 = vmax.f32 %v805, 0.0
    %v1127 = vmax.f32 %v807, 0.0
    %v1128 = vmax.f32 %v998, 0.0
    %v1129 = vmax.f32 %v1000, 0.0
    %v1130 = vpack.c.bf16 %v1006, %v1002
    %v1131 = vpack.c.bf16 %v1007, %v1003
    %v1132 = vpack.c.bf16 %v1008, %v1004
    %v1133 = vpack.c.bf16 %v1009, %v1005
    %v1134 = vpack.c.bf16 %v1014, %v1010
    %v1135 = vpack.c.bf16 %v1015, %v1011
    %v1136 = vpack.c.bf16 %v1016, %v1012
    %v1137 = vpack.c.bf16 %v1017, %v1013
    %v1138 = vpack.c.bf16 %v1022, %v1018
    %v1139 = vpack.c.bf16 %v1023, %v1019
    %v1140 = vpack.c.bf16 %v1024, %v1020
    %v1141 = vpack.c.bf16 %v1025, %v1021
    %v1142 = vpack.c.bf16 %v1030, %v1026
    %v1143 = vpack.c.bf16 %v1031, %v1027
    %v1144 = vpack.c.bf16 %v1032, %v1028
    %v1145 = vpack.c.bf16 %v1033, %v1029
    %v1146 = vpack.c.bf16 %v1038, %v1034
    %v1147 = vpack.c.bf16 %v1039, %v1035
    %v1148 = vpack.c.bf16 %v1040, %v1036
    %v1149 = vpack.c.bf16 %v1041, %v1037
    %v1150 = vpack.c.bf16 %v1046, %v1042
    %v1151 = vpack.c.bf16 %v1047, %v1043
    %v1152 = vpack.c.bf16 %v1048, %v1044
    %v1153 = vpack.c.bf16 %v1049, %v1045
    %v1154 = vpack.c.bf16 %v1054, %v1050
    %v1155 = vpack.c.bf16 %v1055, %v1051
    %v1156 = vpack.c.bf16 %v1056, %v1052
    %v1157 = vpack.c.bf16 %v1057, %v1053
    %v1158 = vpack.c.bf16 %v1062, %v1058
    %v1159 = vpack.c.bf16 %v1063, %v1059
    %v1160 = vpack.c.bf16 %v1064, %v1060
    %v1161 = vpack.c.bf16 %v1065, %v1061
    %v1162 = vpack.c.bf16 %v1070, %v1066
    %v1163 = vpack.c.bf16 %v1071, %v1067
    %v1164 = vpack.c.bf16 %v1072, %v1068
    %v1165 = vpack.c.bf16 %v1073, %v1069
    %v1166 = vpack.c.bf16 %v1078, %v1074
    %v1167 = vpack.c.bf16 %v1079, %v1075
    %v1168 = vpack.c.bf16 %v1080, %v1076
    %v1169 = vpack.c.bf16 %v1081, %v1077
    %v1170 = vpack.c.bf16 %v1086, %v1082
    %v1171 = vpack.c.bf16 %v1087, %v1083
    %v1172 = vpack.c.bf16 %v1088, %v1084
    %v1173 = vpack.c.bf16 %v1089, %v1085
    %v1174 = vpack.c.bf16 %v1094, %v1090
    %v1175 = vpack.c.bf16 %v1095, %v1091
    %v1176 = vpack.c.bf16 %v1096, %v1092
    %v1177 = vpack.c.bf16 %v1097, %v1093
    %v1178 = vpack.c.bf16 %v1102, %v1098
    %v1179 = vpack.c.bf16 %v1103, %v1099
    %v1180 = vpack.c.bf16 %v1104, %v1100
    %v1181 = vpack.c.bf16 %v1105, %v1101
    %v1182 = vpack.c.bf16 %v1110, %v1106
    %v1183 = vpack.c.bf16 %v1111, %v1107
    %v1184 = vpack.c.bf16 %v1112, %v1108
    %v1185 = vpack.c.bf16 %v1113, %v1109
    %v1186 = vpack.c.bf16 %v1118, %v1114
    %v1187 = vpack.c.bf16 %v1119, %v1115
    %v1188 = vpack.c.bf16 %v1120, %v1116
    %v1189 = vpack.c.bf16 %v1121, %v1117
    %v1190 = vpack.c.bf16 %v1126, %v1122
    %v1191 = vpack.c.bf16 %v1127, %v1123
    %v1192 = vpack.c.bf16 %v1128, %v1124
    %v1193 = vpack.c.bf16 %v1129, %v1125
    %v1194 = vld [vmem:[#allocation8] sm:$0xff]
    %v1195 = vld [vmem:[#allocation8 + $0x8] sm:$0xff]
    %v1196 = vld [vmem:[#allocation8 + $0x10] sm:$0xff]
    %v1197 = vld [vmem:[#allocation8 + $0x18] sm:$0xff]
    %v1198 = vld [vmem:[#allocation8 + $0x20] sm:$0xff]
    %v1199 = vld [vmem:[#allocation8 + $0x28] sm:$0xff]
    %v1200 = vld [vmem:[#allocation8 + $0x30] sm:$0xff]
    %v1201 = vld [vmem:[#allocation8 + $0x38] sm:$0xff]
    %v1202 = vld [vmem:[#allocation8 + $0x40] sm:$0xff]
    %v1203 = vld [vmem:[#allocation8 + $0x48] sm:$0xff]
    %v1204 = vld [vmem:[#allocation8 + $0x50] sm:$0xff]
    %v1205 = vld [vmem:[#allocation8 + $0x58] sm:$0xff]
    %v1206 = vld [vmem:[#allocation8 + $0x60] sm:$0xff]
    %v1207 = vld [vmem:[#allocation8 + $0x68] sm:$0xff]
    %v1208 = vld [vmem:[#allocation8 + $0x70] sm:$0xff]
    %v1209 = vld [vmem:[#allocation8 + $0x78] sm:$0xff]
    %v1210 = vld [vmem:[#allocation8 + $0x80] sm:$0xff]
    %v1211 = vld [vmem:[#allocation8 + $0x88] sm:$0xff]
    %v1212 = vld [vmem:[#allocation8 + $0x90] sm:$0xff]
    %v1213 = vld [vmem:[#allocation8 + $0x98] sm:$0xff]
    %v1214 = vld [vmem:[#allocation8 + $0xa0] sm:$0xff]
    %v1215 = vld [vmem:[#allocation8 + $0xa8] sm:$0xff]
    %v1216 = vld [vmem:[#allocation8 + $0xb0] sm:$0xff]
    %v1217 = vld [vmem:[#allocation8 + $0xb8] sm:$0xff]
    %v1218 = vld [vmem:[#allocation8 + $0xc0] sm:$0xff]
    %v1219 = vld [vmem:[#allocation8 + $0xc8] sm:$0xff]
    %v1220 = vld [vmem:[#allocation8 + $0xd0] sm:$0xff]
    %v1221 = vld [vmem:[#allocation8 + $0xd8] sm:$0xff]
    %v1222 = vld [vmem:[#allocation8 + $0xe0] sm:$0xff]
    %v1223 = vld [vmem:[#allocation8 + $0xe8] sm:$0xff]
    %v1224 = vld [vmem:[#allocation8 + $0xf0] sm:$0xff]
    %v1225 = vld [vmem:[#allocation8 + $0xf8] sm:$0xff]
    %v1226 = vld [vmem:[#allocation8 + $0x100] sm:$0xff]
    %v1227 = vld [vmem:[#allocation8 + $0x108] sm:$0xff]
    %v1228 = vld [vmem:[#allocation8 + $0x110] sm:$0xff]
    %v1229 = vld [vmem:[#allocation8 + $0x118] sm:$0xff]
    %v1230 = vld [vmem:[#allocation8 + $0x120] sm:$0xff]
    %v1231 = vld [vmem:[#allocation8 + $0x128] sm:$0xff]
    %v1232 = vld [vmem:[#allocation8 + $0x130] sm:$0xff]
    %v1233 = vld [vmem:[#allocation8 + $0x138] sm:$0xff]
    %v1234 = vld [vmem:[#allocation8 + $0x140] sm:$0xff]
    %v1235 = vld [vmem:[#allocation8 + $0x148] sm:$0xff]
    %v1236 = vld [vmem:[#allocation8 + $0x150] sm:$0xff]
    %v1237 = vld [vmem:[#allocation8 + $0x158] sm:$0xff]
    %v1238 = vld [vmem:[#allocation8 + $0x160] sm:$0xff]
    %v1239 = vld [vmem:[#allocation8 + $0x168] sm:$0xff]
    %v1240 = vld [vmem:[#allocation8 + $0x170] sm:$0xff]
    %v1241 = vld [vmem:[#allocation8 + $0x178] sm:$0xff]
    %v1242 = vld [vmem:[#allocation8 + $0x180] sm:$0xff]
    %v1243 = vld [vmem:[#allocation8 + $0x188] sm:$0xff]
    %v1244 = vld [vmem:[#allocation8 + $0x190] sm:$0xff]
    %v1245 = vld [vmem:[#allocation8 + $0x198] sm:$0xff]
    %v1246 = vld [vmem:[#allocation8 + $0x1a0] sm:$0xff]
    %v1247 = vld [vmem:[#allocation8 + $0x1a8] sm:$0xff]
    %v1248 = vld [vmem:[#allocation8 + $0x1b0] sm:$0xff]
    %v1249 = vld [vmem:[#allocation8 + $0x1b8] sm:$0xff]
    %v1250 = vld [vmem:[#allocation8 + $0x1c0] sm:$0xff]
    %v1251 = vld [vmem:[#allocation8 + $0x1c8] sm:$0xff]
    %v1252 = vld [vmem:[#allocation8 + $0x1d0] sm:$0xff]
    %v1253 = vld [vmem:[#allocation8 + $0x1d8] sm:$0xff]
    %v1254 = vld [vmem:[#allocation8 + $0x1e0] sm:$0xff]
    %v1255 = vld [vmem:[#allocation8 + $0x1e8] sm:$0xff]
    %v1256 = vld [vmem:[#allocation8 + $0x1f0] sm:$0xff]
    %v1257 = vld [vmem:[#allocation8 + $0x1f8] sm:$0xff]
    %v1322 = vunpack.c.l.b16 %v1194
    %v1323 = vunpack.c.h.b16 %v1194
    %v1324 = vunpack.c.l.b16 %v1195
    %v1325 = vunpack.c.h.b16 %v1195
    %v1326 = vunpack.c.l.b16 %v1196
    %v1327 = vunpack.c.h.b16 %v1196
    %v1328 = vunpack.c.l.b16 %v1197
    %v1329 = vunpack.c.h.b16 %v1197
    %v1330 = vunpack.c.l.b16 %v1198
    %v1331 = vunpack.c.h.b16 %v1198
    %v1332 = vunpack.c.l.b16 %v1199
    %v1333 = vunpack.c.h.b16 %v1199
    %v1334 = vunpack.c.l.b16 %v1200
    %v1335 = vunpack.c.h.b16 %v1200
    %v1336 = vunpack.c.l.b16 %v1201
    %v1337 = vunpack.c.h.b16 %v1201
    %v1338 = vunpack.c.l.b16 %v1202
    %v1339 = vunpack.c.h.b16 %v1202
    %v1340 = vunpack.c.l.b16 %v1203
    %v1341 = vunpack.c.h.b16 %v1203
    %v1342 = vunpack.c.l.b16 %v1204
    %v1343 = vunpack.c.h.b16 %v1204
    %v1344 = vunpack.c.l.b16 %v1205
    %v1345 = vunpack.c.h.b16 %v1205
    %v1346 = vunpack.c.l.b16 %v1206
    %v1347 = vunpack.c.h.b16 %v1206
    %v1348 = vunpack.c.l.b16 %v1207
    %v1349 = vunpack.c.h.b16 %v1207
    %v1350 = vunpack.c.l.b16 %v1208
    %v1351 = vunpack.c.h.b16 %v1208
    %v1352 = vunpack.c.l.b16 %v1209
    %v1353 = vunpack.c.h.b16 %v1209
    %v1354 = vunpack.c.l.b16 %v1210
    %v1355 = vunpack.c.h.b16 %v1210
    %v1356 = vunpack.c.l.b16 %v1211
    %v1357 = vunpack.c.h.b16 %v1211
    %v1358 = vunpack.c.l.b16 %v1212
    %v1359 = vunpack.c.h.b16 %v1212
    %v1360 = vunpack.c.l.b16 %v1213
    %v1361 = vunpack.c.h.b16 %v1213
    %v1362 = vunpack.c.l.b16 %v1214
    %v1363 = vunpack.c.h.b16 %v1214
    %v1364 = vunpack.c.l.b16 %v1215
    %v1365 = vunpack.c.h.b16 %v1215
    %v1366 = vunpack.c.l.b16 %v1216
    %v1367 = vunpack.c.h.b16 %v1216
    %v1368 = vunpack.c.l.b16 %v1217
    %v1369 = vunpack.c.h.b16 %v1217
    %v1370 = vunpack.c.l.b16 %v1218
    %v1371 = vunpack.c.h.b16 %v1218
    %v1372 = vunpack.c.l.b16 %v1219
    %v1373 = vunpack.c.h.b16 %v1219
    %v1374 = vunpack.c.l.b16 %v1220
    %v1375 = vunpack.c.h.b16 %v1220
    %v1376 = vunpack.c.l.b16 %v1221
    %v1377 = vunpack.c.h.b16 %v1221
    %v1378 = vunpack.c.l.b16 %v1222
    %v1379 = vunpack.c.h.b16 %v1222
    %v1380 = vunpack.c.l.b16 %v1223
    %v1381 = vunpack.c.h.b16 %v1223
    %v1382 = vunpack.c.l.b16 %v1224
    %v1383 = vunpack.c.h.b16 %v1224
    %v1384 = vunpack.c.l.b16 %v1225
    %v1385 = vunpack.c.h.b16 %v1225
    %v1386 = vunpack.c.l.b16 %v1226
    %v1387 = vunpack.c.h.b16 %v1226
    %v1388 = vunpack.c.l.b16 %v1227
    %v1389 = vunpack.c.h.b16 %v1227
    %v1390 = vunpack.c.l.b16 %v1228
    %v1391 = vunpack.c.h.b16 %v1228
    %v1392 = vunpack.c.l.b16 %v1229
    %v1393 = vunpack.c.h.b16 %v1229
    %v1394 = vunpack.c.l.b16 %v1230
    %v1395 = vunpack.c.h.b16 %v1230
    %v1396 = vunpack.c.l.b16 %v1231
    %v1397 = vunpack.c.h.b16 %v1231
    %v1398 = vunpack.c.l.b16 %v1232
    %v1399 = vunpack.c.h.b16 %v1232
    %v1400 = vunpack.c.l.b16 %v1233
    %v1401 = vunpack.c.h.b16 %v1233
    %v1402 = vunpack.c.l.b16 %v1234
    %v1403 = vunpack.c.h.b16 %v1234
    %v1404 = vunpack.c.l.b16 %v1235
    %v1405 = vunpack.c.h.b16 %v1235
    %v1406 = vunpack.c.l.b16 %v1236
    %v1407 = vunpack.c.h.b16 %v1236
    %v1408 = vunpack.c.l.b16 %v1237
    %v1409 = vunpack.c.h.b16 %v1237
    %v1410 = vunpack.c.l.b16 %v1238
    %v1411 = vunpack.c.h.b16 %v1238
    %v1412 = vunpack.c.l.b16 %v1239
    %v1413 = vunpack.c.h.b16 %v1239
    %v1414 = vunpack.c.l.b16 %v1240
    %v1415 = vunpack.c.h.b16 %v1240
    %v1416 = vunpack.c.l.b16 %v1241
    %v1417 = vunpack.c.h.b16 %v1241
    %v1418 = vunpack.c.l.b16 %v1242
    %v1419 = vunpack.c.h.b16 %v1242
    %v1420 = vunpack.c.l.b16 %v1243
    %v1421 = vunpack.c.h.b16 %v1243
    %v1422 = vunpack.c.l.b16 %v1244
    %v1423 = vunpack.c.h.b16 %v1244
    %v1424 = vunpack.c.l.b16 %v1245
    %v1425 = vunpack.c.h.b16 %v1245
    %v1426 = vunpack.c.l.b16 %v1246
    %v1427 = vunpack.c.h.b16 %v1246
    %v1428 = vunpack.c.l.b16 %v1247
    %v1429 = vunpack.c.h.b16 %v1247
    %v1430 = vunpack.c.l.b16 %v1248
    %v1431 = vunpack.c.h.b16 %v1248
    %v1432 = vunpack.c.l.b16 %v1249
    %v1433 = vunpack.c.h.b16 %v1249
    %v1434 = vunpack.c.l.b16 %v1250
    %v1435 = vunpack.c.h.b16 %v1250
    %v1436 = vunpack.c.l.b16 %v1251
    %v1437 = vunpack.c.h.b16 %v1251
    %v1438 = vunpack.c.l.b16 %v1252
    %v1439 = vunpack.c.h.b16 %v1252
    %v1440 = vunpack.c.l.b16 %v1253
    %v1441 = vunpack.c.h.b16 %v1253
    %v1442 = vunpack.c.l.b16 %v1254
    %v1443 = vunpack.c.h.b16 %v1254
    %v1444 = vunpack.c.l.b16 %v1255
    %v1445 = vunpack.c.h.b16 %v1255
    %v1446 = vunpack.c.l.b16 %v1256
    %v1447 = vunpack.c.h.b16 %v1256
    %v1448 = vunpack.c.l.b16 %v1257
    %v1449 = vunpack.c.h.b16 %v1257
    %v1450 = vpack.c.b16 %v1324, %v1322
    %v1451 = vpack.c.b16 %v1325, %v1323
    %v1452 = vpack.c.b16 %v1328, %v1326
    %v1453 = vpack.c.b16 %v1329, %v1327
    %v1454 = vpack.c.b16 %v1332, %v1330
    %v1455 = vpack.c.b16 %v1333, %v1331
    %v1456 = vpack.c.b16 %v1336, %v1334
    %v1457 = vpack.c.b16 %v1337, %v1335
    %v1458 = vpack.c.b16 %v1340, %v1338
    %v1459 = vpack.c.b16 %v1341, %v1339
    %v1460 = vpack.c.b16 %v1344, %v1342
    %v1461 = vpack.c.b16 %v1345, %v1343
    %v1462 = vpack.c.b16 %v1348, %v1346
    %v1463 = vpack.c.b16 %v1349, %v1347
    %v1464 = vpack.c.b16 %v1352, %v1350
    %v1465 = vpack.c.b16 %v1353, %v1351
    %v1466 = vpack.c.b16 %v1356, %v1354
    %v1467 = vpack.c.b16 %v1357, %v1355
    %v1468 = vpack.c.b16 %v1360, %v1358
    %v1469 = vpack.c.b16 %v1361, %v1359
    %v1470 = vpack.c.b16 %v1364, %v1362
    %v1471 = vpack.c.b16 %v1365, %v1363
    %v1472 = vpack.c.b16 %v1368, %v1366
    %v1473 = vpack.c.b16 %v1369, %v1367
    %v1474 = vpack.c.b16 %v1372, %v1370
    %v1475 = vpack.c.b16 %v1373, %v1371
    %v1476 = vpack.c.b16 %v1376, %v1374
    %v1477 = vpack.c.b16 %v1377, %v1375
    %v1478 = vpack.c.b16 %v1380, %v1378
    %v1479 = vpack.c.b16 %v1381, %v1379
    %v1480 = vpack.c.b16 %v1384, %v1382
    %v1481 = vpack.c.b16 %v1385, %v1383
    %v1482 = vpack.c.b16 %v1388, %v1386
    %v1483 = vpack.c.b16 %v1389, %v1387
    %v1484 = vpack.c.b16 %v1392, %v1390
    %v1485 = vpack.c.b16 %v1393, %v1391
    %v1486 = vpack.c.b16 %v1396, %v1394
    %v1487 = vpack.c.b16 %v1397, %v1395
    %v1488 = vpack.c.b16 %v1400, %v1398
    %v1489 = vpack.c.b16 %v1401, %v1399
    %v1490 = vpack.c.b16 %v1404, %v1402
    %v1491 = vpack.c.b16 %v1405, %v1403
    %v1492 = vpack.c.b16 %v1408, %v1406
    %v1493 = vpack.c.b16 %v1409, %v1407
    %v1494 = vpack.c.b16 %v1412, %v1410
    %v1495 = vpack.c.b16 %v1413, %v1411
    %v1496 = vpack.c.b16 %v1416, %v1414
    %v1497 = vpack.c.b16 %v1417, %v1415
    %v1498 = vpack.c.b16 %v1420, %v1418
    %v1499 = vpack.c.b16 %v1421, %v1419
    %v1500 = vpack.c.b16 %v1424, %v1422
    %v1501 = vpack.c.b16 %v1425, %v1423
    %v1502 = vpack.c.b16 %v1428, %v1426
    %v1503 = vpack.c.b16 %v1429, %v1427
    %v1504 = vpack.c.b16 %v1432, %v1430
    %v1505 = vpack.c.b16 %v1433, %v1431
    %v1506 = vpack.c.b16 %v1436, %v1434
    %v1507 = vpack.c.b16 %v1437, %v1435
    %v1508 = vpack.c.b16 %v1440, %v1438
    %v1509 = vpack.c.b16 %v1441, %v1439
    %v1510 = vpack.c.b16 %v1444, %v1442
    %v1511 = vpack.c.b16 %v1445, %v1443
    %v1512 = vpack.c.b16 %v1448, %v1446
    %v1513 = vpack.c.b16 %v1449, %v1447
    %1578 = vmatprep.subr.bf16.mxu0 %v1451
    %1579 = vmatpush1.bf16.msra.mxu0 %v1450
    %1580 = vmatprep.subr.bf16.mxu0 %v1453
    %1581 = vmatpush1.bf16.msra.mxu0 %v1452
    %1582 = vmatprep.subr.bf16.mxu0 %v1455
    %1583 = vmatpush1.bf16.msra.mxu0 %v1454
    %1584 = vmatprep.subr.bf16.mxu0 %v1457
    %1585 = vmatpush1.bf16.msra.mxu0 %v1456
    %1586 = vmatprep.subr.bf16.mxu0 %v1459
    %1587 = vmatpush1.bf16.msra.mxu0 %v1458
    %1588 = vmatprep.subr.bf16.mxu0 %v1461
    %1589 = vmatpush1.bf16.msra.mxu0 %v1460
    %1590 = vmatprep.subr.bf16.mxu0 %v1463
    %1591 = vmatpush1.bf16.msra.mxu0 %v1462
    %1592 = vmatprep.subr.bf16.mxu0 %v1465
    %1593 = vmatpush1.bf16.msra.mxu0 %v1464
    %1594 = vmatprep.subr.bf16.mxu0 %v1467
    %1595 = vmatpush1.bf16.msra.mxu0 %v1466
    %1596 = vmatprep.subr.bf16.mxu0 %v1469
    %1597 = vmatpush1.bf16.msra.mxu0 %v1468
    %1598 = vmatprep.subr.bf16.mxu0 %v1471
    %1599 = vmatpush1.bf16.msra.mxu0 %v1470
    %1600 = vmatprep.subr.bf16.mxu0 %v1473
    %1601 = vmatpush1.bf16.msra.mxu0 %v1472
    %1602 = vmatprep.subr.bf16.mxu0 %v1475
    %1603 = vmatpush1.bf16.msra.mxu0 %v1474
    %1604 = vmatprep.subr.bf16.mxu0 %v1477
    %1605 = vmatpush1.bf16.msra.mxu0 %v1476
    %1606 = vmatprep.subr.bf16.mxu0 %v1479
    %1607 = vmatpush1.bf16.msra.mxu0 %v1478
    %1608 = vmatprep.subr.bf16.mxu0 %v1481
    %1609 = vmatpush1.bf16.msra.mxu0 %v1480
    %1610 = vmatprep.mubr.bf16.mxu0 %v1131
    %1611 = vmatmul.mubr.bf16.gmra.mrb[0].mxu0 %v1130
    %v1612 = vpop.f32.mrb[0].mxu0
    %v1613 = vadd.f32 0.0, %v1612
    %v1614 = vpop.f32.mrb[0].mxu0
    %v1615 = vadd.f32 0.0, %v1614
    %v1616 = vpop.f32.mrb[0].mxu0
    %v1617 = vadd.f32 0.0, %v1616
    %v1618 = vpop.f32.mrb[0].mxu0
    %v1619 = vadd.f32 0.0, %v1618
    %1620 = vmatprep.mubr.bf16.mxu0 %v1135
    %1621 = vmatmul.mubr.bf16.gmra.mrb[0].mxu0 %v1134
    %v1622 = vpop.f32.mrb[0].mxu0
    %v1623 = vadd.f32 0.0, %v1622
    %v1624 = vpop.f32.mrb[0].mxu0
    %v1625 = vadd.f32 0.0, %v1624
    %v1626 = vpop.f32.mrb[0].mxu0
    %v1627 = vadd.f32 0.0, %v1626
    %v1628 = vpop.f32.mrb[0].mxu0
    %v1629 = vadd.f32 0.0, %v1628
    %1630 = vmatprep.mubr.bf16.mxu0 %v1139
    %1631 = vmatmul.mubr.bf16.gmra.mrb[0].mxu0 %v1138
    %v1632 = vpop.f32.mrb[0].mxu0
    %v1633 = vadd.f32 0.0, %v1632
    %v1634 = vpop.f32.mrb[0].mxu0
    %v1635 = vadd.f32 0.0, %v1634
    %v1636 = vpop.f32.mrb[0].mxu0
    %v1637 = vadd.f32 0.0, %v1636
    %v1638 = vpop.f32.mrb[0].mxu0
    %v1639 = vadd.f32 0.0, %v1638
    %1640 = vmatprep.mubr.bf16.mxu0 %v1143
    %1641 = vmatmul.mubr.bf16.gmra.mrb[0].mxu0 %v1142
    %v1642 = vpop.f32.mrb[0].mxu0
    %v1643 = vadd.f32 0.0, %v1642
    %v1644 = vpop.f32.mrb[0].mxu0
    %v1645 = vadd.f32 0.0, %v1644
    %v1646 = vpop.f32.mrb[0].mxu0
    %v1647 = vadd.f32 0.0, %v1646
    %v1648 = vpop.f32.mrb[0].mxu0
    %v1649 = vadd.f32 0.0, %v1648
    %1650 = vmatprep.mubr.bf16.mxu0 %v1147
    %1651 = vmatmul.mubr.bf16.gmra.mrb[0].mxu0 %v1146
    %v1652 = vpop.f32.mrb[0].mxu0
    %v1653 = vadd.f32 0.0, %v1652
    %v1654 = vpop.f32.mrb[0].mxu0
    %v1655 = vadd.f32 0.0, %v1654
    %v1656 = vpop.f32.mrb[0].mxu0
    %v1657 = vadd.f32 0.0, %v1656
    %v1658 = vpop.f32.mrb[0].mxu0
    %v1659 = vadd.f32 0.0, %v1658
    %1660 = vmatprep.mubr.bf16.mxu0 %v1151
    %1661 = vmatmul.mubr.bf16.gmra.mrb[0].mxu0 %v1150
    %v1662 = vpop.f32.mrb[0].mxu0
    %v1663 = vadd.f32 0.0, %v1662
    %v1664 = vpop.f32.mrb[0].mxu0
    %v1665 = vadd.f32 0.0, %v1664
    %v1666 = vpop.f32.mrb[0].mxu0
    %v1667 = vadd.f32 0.0, %v1666
    %v1668 = vpop.f32.mrb[0].mxu0
    %v1669 = vadd.f32 0.0, %v1668
    %1670 = vmatprep.mubr.bf16.mxu0 %v1155
    %1671 = vmatmul.mubr.bf16.gmra.mrb[0].mxu0 %v1154
    %v1672 = vpop.f32.mrb[0].mxu0
    %v1673 = vadd.f32 0.0, %v1672
    %v1674 = vpop.f32.mrb[0].mxu0
    %v1675 = vadd.f32 0.0, %v1674
    %v1676 = vpop.f32.mrb[0].mxu0
    %v1677 = vadd.f32 0.0, %v1676
    %v1678 = vpop.f32.mrb[0].mxu0
    %v1679 = vadd.f32 0.0, %v1678
    %1680 = vmatprep.mubr.bf16.mxu0 %v1159
    %1681 = vmatmul.mubr.bf16.gmra.mrb[0].mxu0 %v1158
    %v1682 = vpop.f32.mrb[0].mxu0
    %v1683 = vadd.f32 0.0, %v1682
    %v1684 = vpop.f32.mrb[0].mxu0
    %v1685 = vadd.f32 0.0, %v1684
    %v1686 = vpop.f32.mrb[0].mxu0
    %v1687 = vadd.f32 0.0, %v1686
    %v1688 = vpop.f32.mrb[0].mxu0
    %v1689 = vadd.f32 0.0, %v1688
    %1690 = vmatprep.mubr.bf16.mxu0 %v1163
    %1691 = vmatmul.mubr.bf16.gmra.mrb[0].mxu0 %v1162
    %v1692 = vpop.f32.mrb[0].mxu0
    %v1693 = vadd.f32 0.0, %v1692
    %v1694 = vpop.f32.mrb[0].mxu0
    %v1695 = vadd.f32 0.0, %v1694
    %v1696 = vpop.f32.mrb[0].mxu0
    %v1697 = vadd.f32 0.0, %v1696
    %v1698 = vpop.f32.mrb[0].mxu0
    %v1699 = vadd.f32 0.0, %v1698
    %1700 = vmatprep.mubr.bf16.mxu0 %v1167
    %1701 = vmatmul.mubr.bf16.gmra.mrb[0].mxu0 %v1166
    %v1702 = vpop.f32.mrb[0].mxu0
    %v1703 = vadd.f32 0.0, %v1702
    %v1704 = vpop.f32.mrb[0].mxu0
    %v1705 = vadd.f32 0.0, %v1704
    %v1706 = vpop.f32.mrb[0].mxu0
    %v1707 = vadd.f32 0.0, %v1706
    %v1708 = vpop.f32.mrb[0].mxu0
    %v1709 = vadd.f32 0.0, %v1708
    %1710 = vmatprep.mubr.bf16.mxu0 %v1171
    %1711 = vmatmul.mubr.bf16.gmra.mrb[0].mxu0 %v1170
    %v1712 = vpop.f32.mrb[0].mxu0
    %v1713 = vadd.f32 0.0, %v1712
    %v1714 = vpop.f32.mrb[0].mxu0
    %v1715 = vadd.f32 0.0, %v1714
    %v1716 = vpop.f32.mrb[0].mxu0
    %v1717 = vadd.f32 0.0, %v1716
    %v1718 = vpop.f32.mrb[0].mxu0
    %v1719 = vadd.f32 0.0, %v1718
    %1720 = vmatprep.mubr.bf16.mxu0 %v1175
    %1721 = vmatmul.mubr.bf16.gmra.mrb[0].mxu0 %v1174
    %v1722 = vpop.f32.mrb[0].mxu0
    %v1723 = vadd.f32 0.0, %v1722
    %v1724 = vpop.f32.mrb[0].mxu0
    %v1725 = vadd.f32 0.0, %v1724
    %v1726 = vpop.f32.mrb[0].mxu0
    %v1727 = vadd.f32 0.0, %v1726
    %v1728 = vpop.f32.mrb[0].mxu0
    %v1729 = vadd.f32 0.0, %v1728
    %1730 = vmatprep.mubr.bf16.mxu0 %v1179
    %1731 = vmatmul.mubr.bf16.gmra.mrb[0].mxu0 %v1178
    %v1732 = vpop.f32.mrb[0].mxu0
    %v1733 = vadd.f32 0.0, %v1732
    %v1734 = vpop.f32.mrb[0].mxu0
    %v1735 = vadd.f32 0.0, %v1734
    %v1736 = vpop.f32.mrb[0].mxu0
    %v1737 = vadd.f32 0.0, %v1736
    %v1738 = vpop.f32.mrb[0].mxu0
    %v1739 = vadd.f32 0.0, %v1738
    %1740 = vmatprep.mubr.bf16.mxu0 %v1183
    %1741 = vmatmul.mubr.bf16.gmra.mrb[0].mxu0 %v1182
    %v1742 = vpop.f32.mrb[0].mxu0
    %v1743 = vadd.f32 0.0, %v1742
    %v1744 = vpop.f32.mrb[0].mxu0
    %v1745 = vadd.f32 0.0, %v1744
    %v1746 = vpop.f32.mrb[0].mxu0
    %v1747 = vadd.f32 0.0, %v1746
    %v1748 = vpop.f32.mrb[0].mxu0
    %v1749 = vadd.f32 0.0, %v1748
    %1750 = vmatprep.mubr.bf16.mxu0 %v1187
    %1751 = vmatmul.mubr.bf16.gmra.mrb[0].mxu0 %v1186
    %v1752 = vpop.f32.mrb[0].mxu0
    %v1753 = vadd.f32 0.0, %v1752
    %v1754 = vpop.f32.mrb[0].mxu0
    %v1755 = vadd.f32 0.0, %v1754
    %v1756 = vpop.f32.mrb[0].mxu0
    %v1757 = vadd.f32 0.0, %v1756
    %v1758 = vpop.f32.mrb[0].mxu0
    %v1759 = vadd.f32 0.0, %v1758
    %1760 = vmatprep.mubr.bf16.mxu0 %v1191
    %1761 = vmatmul.mubr.bf16.gmra.mrb[0].mxu0 %v1190
    %v1762 = vpop.f32.mrb[0].mxu0
    %v1763 = vadd.f32 0.0, %v1762
    %v1764 = vpop.f32.mrb[0].mxu0
    %v1765 = vadd.f32 0.0, %v1764
    %v1766 = vpop.f32.mrb[0].mxu0
    %v1767 = vadd.f32 0.0, %v1766
    %v1768 = vpop.f32.mrb[0].mxu0
    %v1769 = vadd.f32 0.0, %v1768
    %1770 = vdwg.mxu0
    %1771 = vmatprep.subr.bf16.mxu0 %v1483
    %1772 = vmatpush1.bf16.msra.mxu0 %v1482
    %1773 = vmatprep.subr.bf16.mxu0 %v1485
    %1774 = vmatpush1.bf16.msra.mxu0 %v1484
    %1775 = vmatprep.subr.bf16.mxu0 %v1487
    %1776 = vmatpush1.bf16.msra.mxu0 %v1486
    %1777 = vmatprep.subr.bf16.mxu0 %v1489
    %1778 = vmatpush1.bf16.msra.mxu0 %v1488
    %1779 = vmatprep.subr.bf16.mxu0 %v1491
    %1780 = vmatpush1.bf16.msra.mxu0 %v1490
    %1781 = vmatprep.subr.bf16.mxu0 %v1493
    %1782 = vmatpush1.bf16.msra.mxu0 %v1492
    %1783 = vmatprep.subr.bf16.mxu0 %v1495
    %1784 = vmatpush1.bf16.msra.mxu0 %v1494
    %1785 = vmatprep.subr.bf16.mxu0 %v1497
    %1786 = vmatpush1.bf16.msra.mxu0 %v1496
    %1787 = vmatprep.subr.bf16.mxu0 %v1499
    %1788 = vmatpush1.bf16.msra.mxu0 %v1498
    %1789 = vmatprep.subr.bf16.mxu0 %v1501
    %1790 = vmatpush1.bf16.msra.mxu0 %v1500
    %1791 = vmatprep.subr.bf16.mxu0 %v1503
    %1792 = vmatpush1.bf16.msra.mxu0 %v1502
    %1793 = vmatprep.subr.bf16.mxu0 %v1505
    %1794 = vmatpush1.bf16.msra.mxu0 %v1504
    %1795 = vmatprep.subr.bf16.mxu0 %v1507
    %1796 = vmatpush1.bf16.msra.mxu0 %v1506
    %1797 = vmatprep.subr.bf16.mxu0 %v1509
    %1798 = vmatpush1.bf16.msra.mxu0 %v1508
    %1799 = vmatprep.subr.bf16.mxu0 %v1511
    %1800 = vmatpush1.bf16.msra.mxu0 %v1510
    %1801 = vmatprep.subr.bf16.mxu0 %v1513
    %1802 = vmatpush1.bf16.msra.mxu0 %v1512
    %1803 = vmatprep.mubr.bf16.mxu0 %v1133
    %1804 = vmatmul.mubr.bf16.gmra.mrb[0].mxu0 %v1132
    %v1805 = vpop.f32.mrb[0].mxu0
    %v1806 = vadd.f32 %v1613, %v1805
    %v1807 = vpop.f32.mrb[0].mxu0
    %v1808 = vadd.f32 %v1615, %v1807
    %v1809 = vpop.f32.mrb[0].mxu0
    %v1810 = vadd.f32 %v1617, %v1809
    %v1811 = vpop.f32.mrb[0].mxu0
    %v1812 = vadd.f32 %v1619, %v1811
    %1813 = vmatprep.mubr.bf16.mxu0 %v1137
    %1814 = vmatmul.mubr.bf16.gmra.mrb[0].mxu0 %v1136
    %v1815 = vpop.f32.mrb[0].mxu0
    %v1816 = vadd.f32 %v1623, %v1815
    %v1817 = vpop.f32.mrb[0].mxu0
    %v1818 = vadd.f32 %v1625, %v1817
    %v1819 = vpop.f32.mrb[0].mxu0
    %v1820 = vadd.f32 %v1627, %v1819
    %v1821 = vpop.f32.mrb[0].mxu0
    %v1822 = vadd.f32 %v1629, %v1821
    %1823 = vmatprep.mubr.bf16.mxu0 %v1141
    %1824 = vmatmul.mubr.bf16.gmra.mrb[0].mxu0 %v1140
    %v1825 = vpop.f32.mrb[0].mxu0
    %v1826 = vadd.f32 %v1633, %v1825
    %v1827 = vpop.f32.mrb[0].mxu0
    %v1828 = vadd.f32 %v1635, %v1827
    %v1829 = vpop.f32.mrb[0].mxu0
    %v1830 = vadd.f32 %v1637, %v1829
    %v1831 = vpop.f32.mrb[0].mxu0
    %v1832 = vadd.f32 %v1639, %v1831
    %1833 = vmatprep.mubr.bf16.mxu0 %v1145
    %1834 = vmatmul.mubr.bf16.gmra.mrb[0].mxu0 %v1144
    %v1835 = vpop.f32.mrb[0].mxu0
    %v1836 = vadd.f32 %v1643, %v1835
    %v1837 = vpop.f32.mrb[0].mxu0
    %v1838 = vadd.f32 %v1645, %v1837
    %v1839 = vpop.f32.mrb[0].mxu0
    %v1840 = vadd.f32 %v1647, %v1839
    %v1841 = vpop.f32.mrb[0].mxu0
    %v1842 = vadd.f32 %v1649, %v1841
    %1843 = vmatprep.mubr.bf16.mxu0 %v1149
    %1844 = vmatmul.mubr.bf16.gmra.mrb[0].mxu0 %v1148
    %v1845 = vpop.f32.mrb[0].mxu0
    %v1846 = vadd.f32 %v1653, %v1845
    %v1847 = vpop.f32.mrb[0].mxu0
    %v1848 = vadd.f32 %v1655, %v1847
    %v1849 = vpop.f32.mrb[0].mxu0
    %v1850 = vadd.f32 %v1657, %v1849
    %v1851 = vpop.f32.mrb[0].mxu0
    %v1852 = vadd.f32 %v1659, %v1851
    %1853 = vmatprep.mubr.bf16.mxu0 %v1153
    %1854 = vmatmul.mubr.bf16.gmra.mrb[0].mxu0 %v1152
    %v1855 = vpop.f32.mrb[0].mxu0
    %v1856 = vadd.f32 %v1663, %v1855
    %v1857 = vpop.f32.mrb[0].mxu0
    %v1858 = vadd.f32 %v1665, %v1857
    %v1859 = vpop.f32.mrb[0].mxu0
    %v1860 = vadd.f32 %v1667, %v1859
    %v1861 = vpop.f32.mrb[0].mxu0
    %v1862 = vadd.f32 %v1669, %v1861
    %1863 = vmatprep.mubr.bf16.mxu0 %v1157
    %1864 = vmatmul.mubr.bf16.gmra.mrb[0].mxu0 %v1156
    %v1865 = vpop.f32.mrb[0].mxu0
    %v1866 = vadd.f32 %v1673, %v1865
    %v1867 = vpop.f32.mrb[0].mxu0
    %v1868 = vadd.f32 %v1675, %v1867
    %v1869 = vpop.f32.mrb[0].mxu0
    %v1870 = vadd.f32 %v1677, %v1869
    %v1871 = vpop.f32.mrb[0].mxu0
    %v1872 = vadd.f32 %v1679, %v1871
    %1873 = vmatprep.mubr.bf16.mxu0 %v1161
    %1874 = vmatmul.mubr.bf16.gmra.mrb[0].mxu0 %v1160
    %v1875 = vpop.f32.mrb[0].mxu0
    %v1876 = vadd.f32 %v1683, %v1875
    %v1877 = vpop.f32.mrb[0].mxu0
    %v1878 = vadd.f32 %v1685, %v1877
    %v1879 = vpop.f32.mrb[0].mxu0
    %v1880 = vadd.f32 %v1687, %v1879
    %v1881 = vpop.f32.mrb[0].mxu0
    %v1882 = vadd.f32 %v1689, %v1881
    %1883 = vmatprep.mubr.bf16.mxu0 %v1165
    %1884 = vmatmul.mubr.bf16.gmra.mrb[0].mxu0 %v1164
    %v1885 = vpop.f32.mrb[0].mxu0
    %v1886 = vadd.f32 %v1693, %v1885
    %v1887 = vpop.f32.mrb[0].mxu0
    %v1888 = vadd.f32 %v1695, %v1887
    %v1889 = vpop.f32.mrb[0].mxu0
    %v1890 = vadd.f32 %v1697, %v1889
    %v1891 = vpop.f32.mrb[0].mxu0
    %v1892 = vadd.f32 %v1699, %v1891
    %1893 = vmatprep.mubr.bf16.mxu0 %v1169
    %1894 = vmatmul.mubr.bf16.gmra.mrb[0].mxu0 %v1168
    %v1895 = vpop.f32.mrb[0].mxu0
    %v1896 = vadd.f32 %v1703, %v1895
    %v1897 = vpop.f32.mrb[0].mxu0
    %v1898 = vadd.f32 %v1705, %v1897
    %v1899 = vpop.f32.mrb[0].mxu0
    %v1900 = vadd.f32 %v1707, %v1899
    %v1901 = vpop.f32.mrb[0].mxu0
    %v1902 = vadd.f32 %v1709, %v1901
    %1903 = vmatprep.mubr.bf16.mxu0 %v1173
    %1904 = vmatmul.mubr.bf16.gmra.mrb[0].mxu0 %v1172
    %v1905 = vpop.f32.mrb[0].mxu0
    %v1906 = vadd.f32 %v1713, %v1905
    %v1907 = vpop.f32.mrb[0].mxu0
    %v1908 = vadd.f32 %v1715, %v1907
    %v1909 = vpop.f32.mrb[0].mxu0
    %v1910 = vadd.f32 %v1717, %v1909
    %v1911 = vpop.f32.mrb[0].mxu0
    %v1912 = vadd.f32 %v1719, %v1911
    %1913 = vmatprep.mubr.bf16.mxu0 %v1177
    %1914 = vmatmul.mubr.bf16.gmra.mrb[0].mxu0 %v1176
    %v1915 = vpop.f32.mrb[0].mxu0
    %v1916 = vadd.f32 %v1723, %v1915
    %v1917 = vpop.f32.mrb[0].mxu0
    %v1918 = vadd.f32 %v1725, %v1917
    %v1919 = vpop.f32.mrb[0].mxu0
    %v1920 = vadd.f32 %v1727, %v1919
    %v1921 = vpop.f32.mrb[0].mxu0
    %v1922 = vadd.f32 %v1729, %v1921
    %1923 = vmatprep.mubr.bf16.mxu0 %v1181
    %1924 = vmatmul.mubr.bf16.gmra.mrb[0].mxu0 %v1180
    %v1925 = vpop.f32.mrb[0].mxu0
    %v1926 = vadd.f32 %v1733, %v1925
    %v1927 = vpop.f32.mrb[0].mxu0
    %v1928 = vadd.f32 %v1735, %v1927
    %v1929 = vpop.f32.mrb[0].mxu0
    %v1930 = vadd.f32 %v1737, %v1929
    %v1931 = vpop.f32.mrb[0].mxu0
    %v1932 = vadd.f32 %v1739, %v1931
    %1933 = vmatprep.mubr.bf16.mxu0 %v1185
    %1934 = vmatmul.mubr.bf16.gmra.mrb[0].mxu0 %v1184
    %v1935 = vpop.f32.mrb[0].mxu0
    %v1936 = vadd.f32 %v1743, %v1935
    %v1937 = vpop.f32.mrb[0].mxu0
    %v1938 = vadd.f32 %v1745, %v1937
    %v1939 = vpop.f32.mrb[0].mxu0
    %v1940 = vadd.f32 %v1747, %v1939
    %v1941 = vpop.f32.mrb[0].mxu0
    %v1942 = vadd.f32 %v1749, %v1941
    %1943 = vmatprep.mubr.bf16.mxu0 %v1189
    %1944 = vmatmul.mubr.bf16.gmra.mrb[0].mxu0 %v1188
    %v1945 = vpop.f32.mrb[0].mxu0
    %v1946 = vadd.f32 %v1753, %v1945
    %v1947 = vpop.f32.mrb[0].mxu0
    %v1948 = vadd.f32 %v1755, %v1947
    %v1949 = vpop.f32.mrb[0].mxu0
    %v1950 = vadd.f32 %v1757, %v1949
    %v1951 = vpop.f32.mrb[0].mxu0
    %v1952 = vadd.f32 %v1759, %v1951
    %1953 = vmatprep.mubr.bf16.mxu0 %v1193
    %1954 = vmatmul.mubr.bf16.gmra.mrb[0].mxu0 %v1192
    %v1955 = vpop.f32.mrb[0].mxu0
    %v1956 = vadd.f32 %v1763, %v1955
    %v1957 = vpop.f32.mrb[0].mxu0
    %v1958 = vadd.f32 %v1765, %v1957
    %v1959 = vpop.f32.mrb[0].mxu0
    %v1960 = vadd.f32 %v1767, %v1959
    %v1961 = vpop.f32.mrb[0].mxu0
    %v1962 = vadd.f32 %v1769, %v1961
    %1963 = vdwg.mxu0
    %v1964 = vadd.f32 %v114, %v1806
    %v1965 = vadd.f32 %v115, %v1808
    %v1966 = vadd.f32 %v116, %v1810
    %v1967 = vadd.f32 %v117, %v1812
    %v1968 = vadd.f32 %v118, %v1816
    %v1969 = vadd.f32 %v119, %v1818
    %v1970 = vadd.f32 %v120, %v1820
    %v1971 = vadd.f32 %v121, %v1822
    %v1972 = vadd.f32 %v122, %v1826
    %v1973 = vadd.f32 %v123, %v1828
    %v1974 = vadd.f32 %v124, %v1830
    %v1975 = vadd.f32 %v125, %v1832
    %v1976 = vadd.f32 %v126, %v1836
    %v1977 = vadd.f32 %v127, %v1838
    %v1978 = vadd.f32 %v128, %v1840
    %v1979 = vadd.f32 %v129, %v1842
    %v1980 = vadd.f32 %v130, %v1846
    %v1981 = vadd.f32 %v131, %v1848
    %v1982 = vadd.f32 %v132, %v1850
    %v1983 = vadd.f32 %v133, %v1852
    %v1984 = vadd.f32 %v134, %v1856
    %v1985 = vadd.f32 %v135, %v1858
    %v1986 = vadd.f32 %v136, %v1860
    %v1987 = vadd.f32 %v137, %v1862
    %v1988 = vadd.f32 %v138, %v1866
    %v1989 = vadd.f32 %v139, %v1868
    %v1990 = vadd.f32 %v140, %v1870
    %v1991 = vadd.f32 %v141, %v1872
    %v1992 = vadd.f32 %v142, %v1876
    %v1993 = vadd.f32 %v143, %v1878
    %v1994 = vadd.f32 %v144, %v1880
    %v1995 = vadd.f32 %v145, %v1882
    %v1996 = vadd.f32 %v146, %v1886
    %v1997 = vadd.f32 %v147, %v1888
    %v1998 = vadd.f32 %v148, %v1890
    %v1999 = vadd.f32 %v149, %v1892
    %v2000 = vadd.f32 %v150, %v1896
    %v2001 = vadd.f32 %v151, %v1898
    %v2002 = vadd.f32 %v152, %v1900
    %v2003 = vadd.f32 %v153, %v1902
    %v2004 = vadd.f32 %v154, %v1906
    %v2005 = vadd.f32 %v155, %v1908
    %v2006 = vadd.f32 %v156, %v1910
    %v2007 = vadd.f32 %v157, %v1912
    %v2008 = vadd.f32 %v158, %v1916
    %v2009 = vadd.f32 %v159, %v1918
    %v2010 = vadd.f32 %v160, %v1920
    %v2011 = vadd.f32 %v161, %v1922
    %v2012 = vadd.f32 %v162, %v1926
    %v2013 = vadd.f32 %v163, %v1928
    %v2014 = vadd.f32 %v164, %v1930
    %v2015 = vadd.f32 %v165, %v1932
    %v2016 = vadd.f32 %v166, %v1936
    %v2017 = vadd.f32 %v167, %v1938
    %v2018 = vadd.f32 %v168, %v1940
    %v2019 = vadd.f32 %v169, %v1942
    %v2020 = vadd.f32 %v170, %v1946
    %v2021 = vadd.f32 %v171, %v1948
    %v2022 = vadd.f32 %v172, %v1950
    %v2023 = vadd.f32 %v173, %v1952
    %v2024 = vadd.f32 %v174, %v1956
    %v2025 = vadd.f32 %v175, %v1958
    %v2026 = vadd.f32 %v176, %v1960
    %v2027 = vadd.f32 %v177, %v1962
    %v2028 = vld [vmem:[#allocation10] sm:$0x3]
    %v2030 = vlaneseq
    %v2031 = vshrl.u32 %v2030, 7
    %v2032 = vsub.s32 0, %v2031
    %v2033 = vrot.slane %v2028, %v2032
    %v2034 = vlaneseq
    %v2035 = vshrl.u32 %v2034, 7
    %v2036 = vsub.s32 1, %v2035
    %v2037 = vrot.slane %v2028, %v2036
    %v2040 = vadd.f32 %v1964, %v2033
    %v2041 = vadd.f32 %v1965, %v2037
    %v2042 = vadd.f32 %v1966, %v2033
    %v2043 = vadd.f32 %v1967, %v2037
    %v2044 = vadd.f32 %v1968, %v2033
    %v2045 = vadd.f32 %v1969, %v2037
    %v2046 = vadd.f32 %v1970, %v2033
    %v2047 = vadd.f32 %v1971, %v2037
    %v2048 = vadd.f32 %v1972, %v2033
    %v2049 = vadd.f32 %v1973, %v2037
    %v2050 = vadd.f32 %v1974, %v2033
    %v2051 = vadd.f32 %v1975, %v2037
    %v2052 = vadd.f32 %v1976, %v2033
    %v2053 = vadd.f32 %v1977, %v2037
    %v2054 = vadd.f32 %v1978, %v2033
    %v2055 = vadd.f32 %v1979, %v2037
    %v2056 = vadd.f32 %v1980, %v2033
    %v2057 = vadd.f32 %v1981, %v2037
    %v2058 = vadd.f32 %v1982, %v2033
    %v2059 = vadd.f32 %v1983, %v2037
    %v2060 = vadd.f32 %v1984, %v2033
    %v2061 = vadd.f32 %v1985, %v2037
    %v2062 = vadd.f32 %v1986, %v2033
    %v2063 = vadd.f32 %v1987, %v2037
    %v2064 = vadd.f32 %v1988, %v2033
    %v2065 = vadd.f32 %v1989, %v2037
    %v2066 = vadd.f32 %v1990, %v2033
    %v2067 = vadd.f32 %v1991, %v2037
    %v2068 = vadd.f32 %v1992, %v2033
    %v2069 = vadd.f32 %v1993, %v2037
    %v2070 = vadd.f32 %v1994, %v2033
    %v2071 = vadd.f32 %v1995, %v2037
    %v2072 = vadd.f32 %v1996, %v2033
    %v2073 = vadd.f32 %v1997, %v2037
    %v2074 = vadd.f32 %v1998, %v2033
    %v2075 = vadd.f32 %v1999, %v2037
    %v2076 = vadd.f32 %v2000, %v2033
    %v2077 = vadd.f32 %v2001, %v2037
    %v2078 = vadd.f32 %v2002, %v2033
    %v2079 = vadd.f32 %v2003, %v2037
    %v2080 = vadd.f32 %v2004, %v2033
    %v2081 = vadd.f32 %v2005, %v2037
    %v2082 = vadd.f32 %v2006, %v2033
    %v2083 = vadd.f32 %v2007, %v2037
    %v2084 = vadd.f32 %v2008, %v2033
    %v2085 = vadd.f32 %v2009, %v2037
    %v2086 = vadd.f32 %v2010, %v2033
    %v2087 = vadd.f32 %v2011, %v2037
    %v2088 = vadd.f32 %v2012, %v2033
    %v2089 = vadd.f32 %v2013, %v2037
    %v2090 = vadd.f32 %v2014, %v2033
    %v2091 = vadd.f32 %v2015, %v2037
    %v2092 = vadd.f32 %v2016, %v2033
    %v2093 = vadd.f32 %v2017, %v2037
    %v2094 = vadd.f32 %v2018, %v2033
    %v2095 = vadd.f32 %v2019, %v2037
    %v2096 = vadd.f32 %v2020, %v2033
    %v2097 = vadd.f32 %v2021, %v2037
    %v2098 = vadd.f32 %v2022, %v2033
    %v2099 = vadd.f32 %v2023, %v2037
    %v2100 = vadd.f32 %v2024, %v2033
    %v2101 = vadd.f32 %v2025, %v2037
    %v2102 = vadd.f32 %v2026, %v2033
    %v2103 = vadd.f32 %v2027, %v2037
    %v2104 = vadd.f32 %v2040, %v2041
    %2105 = vadd.xlane.f32.xlu0 %v2104
    %v2106 = vpop.xlane.xlu0 %2105
    %v2107 = vadd.f32 %v2042, %v2043
    %2108 = vadd.xlane.f32.xlu0 %v2107
    %v2109 = vpop.xlane.xlu0 %2108
    %v2110 = vadd.f32 %v2044, %v2045
    %2111 = vadd.xlane.f32.xlu0 %v2110
    %v2112 = vpop.xlane.xlu0 %2111
    %v2113 = vadd.f32 %v2046, %v2047
    %2114 = vadd.xlane.f32.xlu0 %v2113
    %v2115 = vpop.xlane.xlu0 %2114
    %v2116 = vadd.f32 %v2048, %v2049
    %2117 = vadd.xlane.f32.xlu0 %v2116
    %v2118 = vpop.xlane.xlu0 %2117
    %v2119 = vadd.f32 %v2050, %v2051
    %2120 = vadd.xlane.f32.xlu0 %v2119
    %v2121 = vpop.xlane.xlu0 %2120
    %v2122 = vadd.f32 %v2052, %v2053
    %2123 = vadd.xlane.f32.xlu0 %v2122
    %v2124 = vpop.xlane.xlu0 %2123
    %v2125 = vadd.f32 %v2054, %v2055
    %2126 = vadd.xlane.f32.xlu0 %v2125
    %v2127 = vpop.xlane.xlu0 %2126
    %v2128 = vadd.f32 %v2056, %v2057
    %2129 = vadd.xlane.f32.xlu0 %v2128
    %v2130 = vpop.xlane.xlu0 %2129
    %v2131 = vadd.f32 %v2058, %v2059
    %2132 = vadd.xlane.f32.xlu0 %v2131
    %v2133 = vpop.xlane.xlu0 %2132
    %v2134 = vadd.f32 %v2060, %v2061
    %2135 = vadd.xlane.f32.xlu0 %v2134
    %v2136 = vpop.xlane.xlu0 %2135
    %v2137 = vadd.f32 %v2062, %v2063
    %2138 = vadd.xlane.f32.xlu0 %v2137
    %v2139 = vpop.xlane.xlu0 %2138
    %v2140 = vadd.f32 %v2064, %v2065
    %2141 = vadd.xlane.f32.xlu0 %v2140
    %v2142 = vpop.xlane.xlu0 %2141
    %v2143 = vadd.f32 %v2066, %v2067
    %2144 = vadd.xlane.f32.xlu0 %v2143
    %v2145 = vpop.xlane.xlu0 %2144
    %v2146 = vadd.f32 %v2068, %v2069
    %2147 = vadd.xlane.f32.xlu0 %v2146
    %v2148 = vpop.xlane.xlu0 %2147
    %v2149 = vadd.f32 %v2070, %v2071
    %2150 = vadd.xlane.f32.xlu0 %v2149
    %v2151 = vpop.xlane.xlu0 %2150
    %v2152 = vadd.f32 %v2072, %v2073
    %2153 = vadd.xlane.f32.xlu0 %v2152
    %v2154 = vpop.xlane.xlu0 %2153
    %v2155 = vadd.f32 %v2074, %v2075
    %2156 = vadd.xlane.f32.xlu0 %v2155
    %v2157 = vpop.xlane.xlu0 %2156
    %v2158 = vadd.f32 %v2076, %v2077
    %2159 = vadd.xlane.f32.xlu0 %v2158
    %v2160 = vpop.xlane.xlu0 %2159
    %v2161 = vadd.f32 %v2078, %v2079
    %2162 = vadd.xlane.f32.xlu0 %v2161
    %v2163 = vpop.xlane.xlu0 %2162
    %v2164 = vadd.f32 %v2080, %v2081
    %2165 = vadd.xlane.f32.xlu0 %v2164
    %v2166 = vpop.xlane.xlu0 %2165
    %v2167 = vadd.f32 %v2082, %v2083
    %2168 = vadd.xlane.f32.xlu0 %v2167
    %v2169 = vpop.xlane.xlu0 %2168
    %v2170 = vadd.f32 %v2084, %v2085
    %2171 = vadd.xlane.f32.xlu0 %v2170
    %v2172 = vpop.xlane.xlu0 %2171
    %v2173 = vadd.f32 %v2086, %v2087
    %2174 = vadd.xlane.f32.xlu0 %v2173
    %v2175 = vpop.xlane.xlu0 %2174
    %v2176 = vadd.f32 %v2088, %v2089
    %2177 = vadd.xlane.f32.xlu0 %v2176
    %v2178 = vpop.xlane.xlu0 %2177
    %v2179 = vadd.f32 %v2090, %v2091
    %2180 = vadd.xlane.f32.xlu0 %v2179
    %v2181 = vpop.xlane.xlu0 %2180
    %v2182 = vadd.f32 %v2092, %v2093
    %2183 = vadd.xlane.f32.xlu0 %v2182
    %v2184 = vpop.xlane.xlu0 %2183
    %v2185 = vadd.f32 %v2094, %v2095
    %2186 = vadd.xlane.f32.xlu0 %v2185
    %v2187 = vpop.xlane.xlu0 %2186
    %v2188 = vadd.f32 %v2096, %v2097
    %2189 = vadd.xlane.f32.xlu0 %v2188
    %v2190 = vpop.xlane.xlu0 %2189
    %v2191 = vadd.f32 %v2098, %v2099
    %2192 = vadd.xlane.f32.xlu0 %v2191
    %v2193 = vpop.xlane.xlu0 %2192
    %v2194 = vadd.f32 %v2100, %v2101
    %2195 = vadd.xlane.f32.xlu0 %v2194
    %v2196 = vpop.xlane.xlu0 %2195
    %v2197 = vadd.f32 %v2102, %v2103
    %2198 = vadd.xlane.f32.xlu0 %v2197
    %v2199 = vpop.xlane.xlu0 %2198
    %v2200 = vrcp.pop 256.0
    %v2201 = vmul.f32 %v2106, %v2200
    %v2202 = vmul.f32 %v2109, %v2200
    %v2203 = vmul.f32 %v2112, %v2200
    %v2204 = vmul.f32 %v2115, %v2200
    %v2205 = vmul.f32 %v2118, %v2200
    %v2206 = vmul.f32 %v2121, %v2200
    %v2207 = vmul.f32 %v2124, %v2200
    %v2208 = vmul.f32 %v2127, %v2200
    %v2209 = vmul.f32 %v2130, %v2200
    %v2210 = vmul.f32 %v2133, %v2200
    %v2211 = vmul.f32 %v2136, %v2200
    %v2212 = vmul.f32 %v2139, %v2200
    %v2213 = vmul.f32 %v2142, %v2200
    %v2214 = vmul.f32 %v2145, %v2200
    %v2215 = vmul.f32 %v2148, %v2200
    %v2216 = vmul.f32 %v2151, %v2200
    %v2217 = vmul.f32 %v2154, %v2200
    %v2218 = vmul.f32 %v2157, %v2200
    %v2219 = vmul.f32 %v2160, %v2200
    %v2220 = vmul.f32 %v2163, %v2200
    %v2221 = vmul.f32 %v2166, %v2200
    %v2222 = vmul.f32 %v2169, %v2200
    %v2223 = vmul.f32 %v2172, %v2200
    %v2224 = vmul.f32 %v2175, %v2200
    %v2225 = vmul.f32 %v2178, %v2200
    %v2226 = vmul.f32 %v2181, %v2200
    %v2227 = vmul.f32 %v2184, %v2200
    %v2228 = vmul.f32 %v2187, %v2200
    %v2229 = vmul.f32 %v2190, %v2200
    %v2230 = vmul.f32 %v2193, %v2200
    %v2231 = vmul.f32 %v2196, %v2200
    %v2232 = vmul.f32 %v2199, %v2200
    %v2233 = vsub.f32 %v2040, %v2201
    %v2234 = vsub.f32 %v2041, %v2201
    %v2235 = vsub.f32 %v2042, %v2202
    %v2236 = vsub.f32 %v2043, %v2202
    %v2237 = vsub.f32 %v2044, %v2203
    %v2238 = vsub.f32 %v2045, %v2203
    %v2239 = vsub.f32 %v2046, %v2204
    %v2240 = vsub.f32 %v2047, %v2204
    %v2241 = vsub.f32 %v2048, %v2205
    %v2242 = vsub.f32 %v2049, %v2205
    %v2243 = vsub.f32 %v2050, %v2206
    %v2244 = vsub.f32 %v2051, %v2206
    %v2245 = vsub.f32 %v2052, %v2207
    %v2246 = vsub.f32 %v2053, %v2207
    %v2247 = vsub.f32 %v2054, %v2208
    %v2248 = vsub.f32 %v2055, %v2208
    %v2249 = vsub.f32 %v2056, %v2209
    %v2250 = vsub.f32 %v2057, %v2209
    %v2251 = vsub.f32 %v2058, %v2210
    %v2252 = vsub.f32 %v2059, %v2210
    %v2253 = vsub.f32 %v2060, %v2211
    %v2254 = vsub.f32 %v2061, %v2211
    %v2255 = vsub.f32 %v2062, %v2212
    %v2256 = vsub.f32 %v2063, %v2212
    %v2257 = vsub.f32 %v2064, %v2213
    %v2258 = vsub.f32 %v2065, %v2213
    %v2259 = vsub.f32 %v2066, %v2214
    %v2260 = vsub.f32 %v2067, %v2214
    %v2261 = vsub.f32 %v2068, %v2215
    %v2262 = vsub.f32 %v2069, %v2215
    %v2263 = vsub.f32 %v2070, %v2216
    %v2264 = vsub.f32 %v2071, %v2216
    %v2265 = vsub.f32 %v2072, %v2217
    %v2266 = vsub.f32 %v2073, %v2217
    %v2267 = vsub.f32 %v2074, %v2218
    %v2268 = vsub.f32 %v2075, %v2218
    %v2269 = vsub.f32 %v2076, %v2219
    %v2270 = vsub.f32 %v2077, %v2219
    %v2271 = vsub.f32 %v2078, %v2220
    %v2272 = vsub.f32 %v2079, %v2220
    %v2273 = vsub.f32 %v2080, %v2221
    %v2274 = vsub.f32 %v2081, %v2221
    %v2275 = vsub.f32 %v2082, %v2222
    %v2276 = vsub.f32 %v2083, %v2222
    %v2277 = vsub.f32 %v2084, %v2223
    %v2278 = vsub.f32 %v2085, %v2223
    %v2279 = vsub.f32 %v2086, %v2224
    %v2280 = vsub.f32 %v2087, %v2224
    %v2281 = vsub.f32 %v2088, %v2225
    %v2282 = vsub.f32 %v2089, %v2225
    %v2283 = vsub.f32 %v2090, %v2226
    %v2284 = vsub.f32 %v2091, %v2226
    %v2285 = vsub.f32 %v2092, %v2227
    %v2286 = vsub.f32 %v2093, %v2227
    %v2287 = vsub.f32 %v2094, %v2228
    %v2288 = vsub.f32 %v2095, %v2228
    %v2289 = vsub.f32 %v2096, %v2229
    %v2290 = vsub.f32 %v2097, %v2229
    %v2291 = vsub.f32 %v2098, %v2230
    %v2292 = vsub.f32 %v2099, %v2230
    %v2293 = vsub.f32 %v2100, %v2231
    %v2294 = vsub.f32 %v2101, %v2231
    %v2295 = vsub.f32 %v2102, %v2232
    %v2296 = vsub.f32 %v2103, %v2232
    %v2297 = vmul.f32 %v2233, %v2233
    %v2298 = vmul.f32 %v2234, %v2234
    %v2299 = vmul.f32 %v2235, %v2235
    %v2300 = vmul.f32 %v2236, %v2236
    %v2301 = vmul.f32 %v2237, %v2237
    %v2302 = vmul.f32 %v2238, %v2238
    %v2303 = vmul.f32 %v2239, %v2239
    %v2304 = vmul.f32 %v2240, %v2240
    %v2305 = vmul.f32 %v2241, %v2241
    %v2306 = vmul.f32 %v2242, %v2242
    %v2307 = vmul.f32 %v2243, %v2243
    %v2308 = vmul.f32 %v2244, %v2244
    %v2309 = vmul.f32 %v2245, %v2245
    %v2310 = vmul.f32 %v2246, %v2246
    %v2311 = vmul.f32 %v2247, %v2247
    %v2312 = vmul.f32 %v2248, %v2248
    %v2313 = vmul.f32 %v2249, %v2249
    %v2314 = vmul.f32 %v2250, %v2250
    %v2315 = vmul.f32 %v2251, %v2251
    %v2316 = vmul.f32 %v2252, %v2252
    %v2317 = vmul.f32 %v2253, %v2253
    %v2318 = vmul.f32 %v2254, %v2254
    %v2319 = vmul.f32 %v2255, %v2255
    %v2320 = vmul.f32 %v2256, %v2256
    %v2321 = vmul.f32 %v2257, %v2257
    %v2322 = vmul.f32 %v2258, %v2258
    %v2323 = vmul.f32 %v2259, %v2259
    %v2324 = vmul.f32 %v2260, %v2260
    %v2325 = vmul.f32 %v2261, %v2261
    %v2326 = vmul.f32 %v2262, %v2262
    %v2327 = vmul.f32 %v2263, %v2263
    %v2328 = vmul.f32 %v2264, %v2264
    %v2329 = vmul.f32 %v2265, %v2265
    %v2330 = vmul.f32 %v2266, %v2266
    %v2331 = vmul.f32 %v2267, %v2267
    %v2332 = vmul.f32 %v2268, %v2268
    %v2333 = vmul.f32 %v2269, %v2269
    %v2334 = vmul.f32 %v2270, %v2270
    %v2335 = vmul.f32 %v2271, %v2271
    %v2336 = vmul.f32 %v2272, %v2272
    %v2337 = vmul.f32 %v2273, %v2273
    %v2338 = vmul.f32 %v2274, %v2274
    %v2339 = vmul.f32 %v2275, %v2275
    %v2340 = vmul.f32 %v2276, %v2276
    %v2341 = vmul.f32 %v2277, %v2277
    %v2342 = vmul.f32 %v2278, %v2278
    %v2343 = vmul.f32 %v2279, %v2279
    %v2344 = vmul.f32 %v2280, %v2280
    %v2345 = vmul.f32 %v2281, %v2281
    %v2346 = vmul.f32 %v2282, %v2282
    %v2347 = vmul.f32 %v2283, %v2283
    %v2348 = vmul.f32 %v2284, %v2284
    %v2349 = vmul.f32 %v2285, %v2285
    %v2350 = vmul.f32 %v2286, %v2286
    %v2351 = vmul.f32 %v2287, %v2287
    %v2352 = vmul.f32 %v2288, %v2288
    %v2353 = vmul.f32 %v2289, %v2289
    %v2354 = vmul.f32 %v2290, %v2290
    %v2355 = vmul.f32 %v2291, %v2291
    %v2356 = vmul.f32 %v2292, %v2292
    %v2357 = vmul.f32 %v2293, %v2293
    %v2358 = vmul.f32 %v2294, %v2294
    %v2359 = vmul.f32 %v2295, %v2295
    %v2360 = vmul.f32 %v2296, %v2296
    %v2361 = vadd.f32 %v2297, %v2298
    %2362 = vadd.xlane.f32.xlu0 %v2361
    %v2363 = vpop.xlane.xlu0 %2362
    %v2364 = vadd.f32 %v2299, %v2300
    %2365 = vadd.xlane.f32.xlu0 %v2364
    %v2366 = vpop.xlane.xlu0 %2365
    %v2367 = vadd.f32 %v2301, %v2302
    %2368 = vadd.xlane.f32.xlu0 %v2367
    %v2369 = vpop.xlane.xlu0 %2368
    %v2370 = vadd.f32 %v2303, %v2304
    %2371 = vadd.xlane.f32.xlu0 %v2370
    %v2372 = vpop.xlane.xlu0 %2371
    %v2373 = vadd.f32 %v2305, %v2306
    %2374 = vadd.xlane.f32.xlu0 %v2373
    %v2375 = vpop.xlane.xlu0 %2374
    %v2376 = vadd.f32 %v2307, %v2308
    %2377 = vadd.xlane.f32.xlu0 %v2376
    %v2378 = vpop.xlane.xlu0 %2377
    %v2379 = vadd.f32 %v2309, %v2310
    %2380 = vadd.xlane.f32.xlu0 %v2379
    %v2381 = vpop.xlane.xlu0 %2380
    %v2382 = vadd.f32 %v2311, %v2312
    %2383 = vadd.xlane.f32.xlu0 %v2382
    %v2384 = vpop.xlane.xlu0 %2383
    %v2385 = vadd.f32 %v2313, %v2314
    %2386 = vadd.xlane.f32.xlu0 %v2385
    %v2387 = vpop.xlane.xlu0 %2386
    %v2388 = vadd.f32 %v2315, %v2316
    %2389 = vadd.xlane.f32.xlu0 %v2388
    %v2390 = vpop.xlane.xlu0 %2389
    %v2391 = vadd.f32 %v2317, %v2318
    %2392 = vadd.xlane.f32.xlu0 %v2391
    %v2393 = vpop.xlane.xlu0 %2392
    %v2394 = vadd.f32 %v2319, %v2320
    %2395 = vadd.xlane.f32.xlu0 %v2394
    %v2396 = vpop.xlane.xlu0 %2395
    %v2397 = vadd.f32 %v2321, %v2322
    %2398 = vadd.xlane.f32.xlu0 %v2397
    %v2399 = vpop.xlane.xlu0 %2398
    %v2400 = vadd.f32 %v2323, %v2324
    %2401 = vadd.xlane.f32.xlu0 %v2400
    %v2402 = vpop.xlane.xlu0 %2401
    %v2403 = vadd.f32 %v2325, %v2326
    %2404 = vadd.xlane.f32.xlu0 %v2403
    %v2405 = vpop.xlane.xlu0 %2404
    %v2406 = vadd.f32 %v2327, %v2328
    %2407 = vadd.xlane.f32.xlu0 %v2406
    %v2408 = vpop.xlane.xlu0 %2407
    %v2409 = vadd.f32 %v2329, %v2330
    %2410 = vadd.xlane.f32.xlu0 %v2409
    %v2411 = vpop.xlane.xlu0 %2410
    %v2412 = vadd.f32 %v2331, %v2332
    %2413 = vadd.xlane.f32.xlu0 %v2412
    %v2414 = vpop.xlane.xlu0 %2413
    %v2415 = vadd.f32 %v2333, %v2334
    %2416 = vadd.xlane.f32.xlu0 %v2415
    %v2417 = vpop.xlane.xlu0 %2416
    %v2418 = vadd.f32 %v2335, %v2336
    %2419 = vadd.xlane.f32.xlu0 %v2418
    %v2420 = vpop.xlane.xlu0 %2419
    %v2421 = vadd.f32 %v2337, %v2338
    %2422 = vadd.xlane.f32.xlu0 %v2421
    %v2423 = vpop.xlane.xlu0 %2422
    %v2424 = vadd.f32 %v2339, %v2340
    %2425 = vadd.xlane.f32.xlu0 %v2424
    %v2426 = vpop.xlane.xlu0 %2425
    %v2427 = vadd.f32 %v2341, %v2342
    %2428 = vadd.xlane.f32.xlu0 %v2427
    %v2429 = vpop.xlane.xlu0 %2428
    %v2430 = vadd.f32 %v2343, %v2344
    %2431 = vadd.xlane.f32.xlu0 %v2430
    %v2432 = vpop.xlane.xlu0 %2431
    %v2433 = vadd.f32 %v2345, %v2346
    %2434 = vadd.xlane.f32.xlu0 %v2433
    %v2435 = vpop.xlane.xlu0 %2434
    %v2436 = vadd.f32 %v2347, %v2348
    %2437 = vadd.xlane.f32.xlu0 %v2436
    %v2438 = vpop.xlane.xlu0 %2437
    %v2439 = vadd.f32 %v2349, %v2350
    %2440 = vadd.xlane.f32.xlu0 %v2439
    %v2441 = vpop.xlane.xlu0 %2440
    %v2442 = vadd.f32 %v2351, %v2352
    %2443 = vadd.xlane.f32.xlu0 %v2442
    %v2444 = vpop.xlane.xlu0 %2443
    %v2445 = vadd.f32 %v2353, %v2354
    %2446 = vadd.xlane.f32.xlu0 %v2445
    %v2447 = vpop.xlane.xlu0 %2446
    %v2448 = vadd.f32 %v2355, %v2356
    %2449 = vadd.xlane.f32.xlu0 %v2448
    %v2450 = vpop.xlane.xlu0 %2449
    %v2451 = vadd.f32 %v2357, %v2358
    %2452 = vadd.xlane.f32.xlu0 %v2451
    %v2453 = vpop.xlane.xlu0 %2452
    %v2454 = vadd.f32 %v2359, %v2360
    %2455 = vadd.xlane.f32.xlu0 %v2454
    %v2456 = vpop.xlane.xlu0 %2455
    %v2457 = vmul.f32 %v2363, %v2200
    %v2458 = vmul.f32 %v2366, %v2200
    %v2459 = vmul.f32 %v2369, %v2200
    %v2460 = vmul.f32 %v2372, %v2200
    %v2461 = vmul.f32 %v2375, %v2200
    %v2462 = vmul.f32 %v2378, %v2200
    %v2463 = vmul.f32 %v2381, %v2200
    %v2464 = vmul.f32 %v2384, %v2200
    %v2465 = vmul.f32 %v2387, %v2200
    %v2466 = vmul.f32 %v2390, %v2200
    %v2467 = vmul.f32 %v2393, %v2200
    %v2468 = vmul.f32 %v2396, %v2200
    %v2469 = vmul.f32 %v2399, %v2200
    %v2470 = vmul.f32 %v2402, %v2200
    %v2471 = vmul.f32 %v2405, %v2200
    %v2472 = vmul.f32 %v2408, %v2200
    %v2473 = vmul.f32 %v2411, %v2200
    %v2474 = vmul.f32 %v2414, %v2200
    %v2475 = vmul.f32 %v2417, %v2200
    %v2476 = vmul.f32 %v2420, %v2200
    %v2477 = vmul.f32 %v2423, %v2200
    %v2478 = vmul.f32 %v2426, %v2200
    %v2479 = vmul.f32 %v2429, %v2200
    %v2480 = vmul.f32 %v2432, %v2200
    %v2481 = vmul.f32 %v2435, %v2200
    %v2482 = vmul.f32 %v2438, %v2200
    %v2483 = vmul.f32 %v2441, %v2200
    %v2484 = vmul.f32 %v2444, %v2200
    %v2485 = vmul.f32 %v2447, %v2200
    %v2486 = vmul.f32 %v2450, %v2200
    %v2487 = vmul.f32 %v2453, %v2200
    %v2488 = vmul.f32 %v2456, %v2200
    %v2489 = vadd.f32 %v2457, 1e-05
    %v2490 = vadd.f32 %v2458, 1e-05
    %v2491 = vadd.f32 %v2459, 1e-05
    %v2492 = vadd.f32 %v2460, 1e-05
    %v2493 = vadd.f32 %v2461, 1e-05
    %v2494 = vadd.f32 %v2462, 1e-05
    %v2495 = vadd.f32 %v2463, 1e-05
    %v2496 = vadd.f32 %v2464, 1e-05
    %v2497 = vadd.f32 %v2465, 1e-05
    %v2498 = vadd.f32 %v2466, 1e-05
    %v2499 = vadd.f32 %v2467, 1e-05
    %v2500 = vadd.f32 %v2468, 1e-05
    %v2501 = vadd.f32 %v2469, 1e-05
    %v2502 = vadd.f32 %v2470, 1e-05
    %v2503 = vadd.f32 %v2471, 1e-05
    %v2504 = vadd.f32 %v2472, 1e-05
    %v2505 = vadd.f32 %v2473, 1e-05
    %v2506 = vadd.f32 %v2474, 1e-05
    %v2507 = vadd.f32 %v2475, 1e-05
    %v2508 = vadd.f32 %v2476, 1e-05
    %v2509 = vadd.f32 %v2477, 1e-05
    %v2510 = vadd.f32 %v2478, 1e-05
    %v2511 = vadd.f32 %v2479, 1e-05
    %v2512 = vadd.f32 %v2480, 1e-05
    %v2513 = vadd.f32 %v2481, 1e-05
    %v2514 = vadd.f32 %v2482, 1e-05
    %v2515 = vadd.f32 %v2483, 1e-05
    %v2516 = vadd.f32 %v2484, 1e-05
    %v2517 = vadd.f32 %v2485, 1e-05
    %v2518 = vadd.f32 %v2486, 1e-05
    %v2519 = vadd.f32 %v2487, 1e-05
    %v2520 = vadd.f32 %v2488, 1e-05
    %v2521 = vrsqrt.pop %v2489
    %v2522 = vrsqrt.pop %v2490
    %v2523 = vrsqrt.pop %v2491
    %v2524 = vrsqrt.pop %v2492
    %v2525 = vrsqrt.pop %v2493
    %v2526 = vrsqrt.pop %v2494
    %v2527 = vrsqrt.pop %v2495
    %v2528 = vrsqrt.pop %v2496
    %v2529 = vrsqrt.pop %v2497
    %v2530 = vrsqrt.pop %v2498
    %v2531 = vrsqrt.pop %v2499
    %v2532 = vrsqrt.pop %v2500
    %v2533 = vrsqrt.pop %v2501
    %v2534 = vrsqrt.pop %v2502
    %v2535 = vrsqrt.pop %v2503
    %v2536 = vrsqrt.pop %v2504
    %v2537 = vrsqrt.pop %v2505
    %v2538 = vrsqrt.pop %v2506
    %v2539 = vrsqrt.pop %v2507
    %v2540 = vrsqrt.pop %v2508
    %v2541 = vrsqrt.pop %v2509
    %v2542 = vrsqrt.pop %v2510
    %v2543 = vrsqrt.pop %v2511
    %v2544 = vrsqrt.pop %v2512
    %v2545 = vrsqrt.pop %v2513
    %v2546 = vrsqrt.pop %v2514
    %v2547 = vrsqrt.pop %v2515
    %v2548 = vrsqrt.pop %v2516
    %v2549 = vrsqrt.pop %v2517
    %v2550 = vrsqrt.pop %v2518
    %v2551 = vrsqrt.pop %v2519
    %v2552 = vrsqrt.pop %v2520
    %v2553 = vmul.f32 %v2233, %v2521
    %v2554 = vmul.f32 %v2234, %v2521
    %v2555 = vmul.f32 %v2235, %v2522
    %v2556 = vmul.f32 %v2236, %v2522
    %v2557 = vmul.f32 %v2237, %v2523
    %v2558 = vmul.f32 %v2238, %v2523
    %v2559 = vmul.f32 %v2239, %v2524
    %v2560 = vmul.f32 %v2240, %v2524
    %v2561 = vmul.f32 %v2241, %v2525
    %v2562 = vmul.f32 %v2242, %v2525
    %v2563 = vmul.f32 %v2243, %v2526
    %v2564 = vmul.f32 %v2244, %v2526
    %v2565 = vmul.f32 %v2245, %v2527
    %v2566 = vmul.f32 %v2246, %v2527
    %v2567 = vmul.f32 %v2247, %v2528
    %v2568 = vmul.f32 %v2248, %v2528
    %v2569 = vmul.f32 %v2249, %v2529
    %v2570 = vmul.f32 %v2250, %v2529
    %v2571 = vmul.f32 %v2251, %v2530
    %v2572 = vmul.f32 %v2252, %v2530
    %v2573 = vmul.f32 %v2253, %v2531
    %v2574 = vmul.f32 %v2254, %v2531
    %v2575 = vmul.f32 %v2255, %v2532
    %v2576 = vmul.f32 %v2256, %v2532
    %v2577 = vmul.f32 %v2257, %v2533
    %v2578 = vmul.f32 %v2258, %v2533
    %v2579 = vmul.f32 %v2259, %v2534
    %v2580 = vmul.f32 %v2260, %v2534
    %v2581 = vmul.f32 %v2261, %v2535
    %v2582 = vmul.f32 %v2262, %v2535
    %v2583 = vmul.f32 %v2263, %v2536
    %v2584 = vmul.f32 %v2264, %v2536
    %v2585 = vmul.f32 %v2265, %v2537
    %v2586 = vmul.f32 %v2266, %v2537
    %v2587 = vmul.f32 %v2267, %v2538
    %v2588 = vmul.f32 %v2268, %v2538
    %v2589 = vmul.f32 %v2269, %v2539
    %v2590 = vmul.f32 %v2270, %v2539
    %v2591 = vmul.f32 %v2271, %v2540
    %v2592 = vmul.f32 %v2272, %v2540
    %v2593 = vmul.f32 %v2273, %v2541
    %v2594 = vmul.f32 %v2274, %v2541
    %v2595 = vmul.f32 %v2275, %v2542
    %v2596 = vmul.f32 %v2276, %v2542
    %v2597 = vmul.f32 %v2277, %v2543
    %v2598 = vmul.f32 %v2278, %v2543
    %v2599 = vmul.f32 %v2279, %v2544
    %v2600 = vmul.f32 %v2280, %v2544
    %v2601 = vmul.f32 %v2281, %v2545
    %v2602 = vmul.f32 %v2282, %v2545
    %v2603 = vmul.f32 %v2283, %v2546
    %v2604 = vmul.f32 %v2284, %v2546
    %v2605 = vmul.f32 %v2285, %v2547
    %v2606 = vmul.f32 %v2286, %v2547
    %v2607 = vmul.f32 %v2287, %v2548
    %v2608 = vmul.f32 %v2288, %v2548
    %v2609 = vmul.f32 %v2289, %v2549
    %v2610 = vmul.f32 %v2290, %v2549
    %v2611 = vmul.f32 %v2291, %v2550
    %v2612 = vmul.f32 %v2292, %v2550
    %v2613 = vmul.f32 %v2293, %v2551
    %v2614 = vmul.f32 %v2294, %v2551
    %v2615 = vmul.f32 %v2295, %v2552
    %v2616 = vmul.f32 %v2296, %v2552
    %v2617 = vld [vmem:[#allocation11] sm:$0x3]
    %v2619 = vlaneseq
    %v2620 = vshrl.u32 %v2619, 7
    %v2621 = vsub.s32 0, %v2620
    %v2622 = vrot.slane %v2617, %v2621
    %v2623 = vlaneseq
    %v2624 = vshrl.u32 %v2623, 7
    %v2625 = vsub.s32 1, %v2624
    %v2626 = vrot.slane %v2617, %v2625
    %v2629 = vmul.f32 %v2553, %v2622
    %v2630 = vmul.f32 %v2554, %v2626
    %v2631 = vmul.f32 %v2555, %v2622
    %v2632 = vmul.f32 %v2556, %v2626
    %v2633 = vmul.f32 %v2557, %v2622
    %v2634 = vmul.f32 %v2558, %v2626
    %v2635 = vmul.f32 %v2559, %v2622
    %v2636 = vmul.f32 %v2560, %v2626
    %v2637 = vmul.f32 %v2561, %v2622
    %v2638 = vmul.f32 %v2562, %v2626
    %v2639 = vmul.f32 %v2563, %v2622
    %v2640 = vmul.f32 %v2564, %v2626
    %v2641 = vmul.f32 %v2565, %v2622
    %v2642 = vmul.f32 %v2566, %v2626
    %v2643 = vmul.f32 %v2567, %v2622
    %v2644 = vmul.f32 %v2568, %v2626
    %v2645 = vmul.f32 %v2569, %v2622
    %v2646 = vmul.f32 %v2570, %v2626
    %v2647 = vmul.f32 %v2571, %v2622
    %v2648 = vmul.f32 %v2572, %v2626
    %v2649 = vmul.f32 %v2573, %v2622
    %v2650 = vmul.f32 %v2574, %v2626
    %v2651 = vmul.f32 %v2575, %v2622
    %v2652 = vmul.f32 %v2576, %v2626
    %v2653 = vmul.f32 %v2577, %v2622
    %v2654 = vmul.f32 %v2578, %v2626
    %v2655 = vmul.f32 %v2579, %v2622
    %v2656 = vmul.f32 %v2580, %v2626
    %v2657 = vmul.f32 %v2581, %v2622
    %v2658 = vmul.f32 %v2582, %v2626
    %v2659 = vmul.f32 %v2583, %v2622
    %v2660 = vmul.f32 %v2584, %v2626
    %v2661 = vmul.f32 %v2585, %v2622
    %v2662 = vmul.f32 %v2586, %v2626
    %v2663 = vmul.f32 %v2587, %v2622
    %v2664 = vmul.f32 %v2588, %v2626
    %v2665 = vmul.f32 %v2589, %v2622
    %v2666 = vmul.f32 %v2590, %v2626
    %v2667 = vmul.f32 %v2591, %v2622
    %v2668 = vmul.f32 %v2592, %v2626
    %v2669 = vmul.f32 %v2593, %v2622
    %v2670 = vmul.f32 %v2594, %v2626
    %v2671 = vmul.f32 %v2595, %v2622
    %v2672 = vmul.f32 %v2596, %v2626
    %v2673 = vmul.f32 %v2597, %v2622
    %v2674 = vmul.f32 %v2598, %v2626
    %v2675 = vmul.f32 %v2599, %v2622
    %v2676 = vmul.f32 %v2600, %v2626
    %v2677 = vmul.f32 %v2601, %v2622
    %v2678 = vmul.f32 %v2602, %v2626
    %v2679 = vmul.f32 %v2603, %v2622
    %v2680 = vmul.f32 %v2604, %v2626
    %v2681 = vmul.f32 %v2605, %v2622
    %v2682 = vmul.f32 %v2606, %v2626
    %v2683 = vmul.f32 %v2607, %v2622
    %v2684 = vmul.f32 %v2608, %v2626
    %v2685 = vmul.f32 %v2609, %v2622
    %v2686 = vmul.f32 %v2610, %v2626
    %v2687 = vmul.f32 %v2611, %v2622
    %v2688 = vmul.f32 %v2612, %v2626
    %v2689 = vmul.f32 %v2613, %v2622
    %v2690 = vmul.f32 %v2614, %v2626
    %v2691 = vmul.f32 %v2615, %v2622
    %v2692 = vmul.f32 %v2616, %v2626
    %v2693 = vld [vmem:[#allocation13] sm:$0x3]
    %v2695 = vlaneseq
    %v2696 = vshrl.u32 %v2695, 7
    %v2697 = vsub.s32 0, %v2696
    %v2698 = vrot.slane %v2693, %v2697
    %v2699 = vlaneseq
    %v2700 = vshrl.u32 %v2699, 7
    %v2701 = vsub.s32 1, %v2700
    %v2702 = vrot.slane %v2693, %v2701
    %v2705 = vadd.f32 %v2629, %v2698
    %v2706 = vadd.f32 %v2630, %v2702
    %v2707 = vadd.f32 %v2631, %v2698
    %v2708 = vadd.f32 %v2632, %v2702
    %v2709 = vadd.f32 %v2633, %v2698
    %v2710 = vadd.f32 %v2634, %v2702
    %v2711 = vadd.f32 %v2635, %v2698
    %v2712 = vadd.f32 %v2636, %v2702
    %v2713 = vadd.f32 %v2637, %v2698
    %v2714 = vadd.f32 %v2638, %v2702
    %v2715 = vadd.f32 %v2639, %v2698
    %v2716 = vadd.f32 %v2640, %v2702
    %v2717 = vadd.f32 %v2641, %v2698
    %v2718 = vadd.f32 %v2642, %v2702
    %v2719 = vadd.f32 %v2643, %v2698
    %v2720 = vadd.f32 %v2644, %v2702
    %v2721 = vadd.f32 %v2645, %v2698
    %v2722 = vadd.f32 %v2646, %v2702
    %v2723 = vadd.f32 %v2647, %v2698
    %v2724 = vadd.f32 %v2648, %v2702
    %v2725 = vadd.f32 %v2649, %v2698
    %v2726 = vadd.f32 %v2650, %v2702
    %v2727 = vadd.f32 %v2651, %v2698
    %v2728 = vadd.f32 %v2652, %v2702
    %v2729 = vadd.f32 %v2653, %v2698
    %v2730 = vadd.f32 %v2654, %v2702
    %v2731 = vadd.f32 %v2655, %v2698
    %v2732 = vadd.f32 %v2656, %v2702
    %v2733 = vadd.f32 %v2657, %v2698
    %v2734 = vadd.f32 %v2658, %v2702
    %v2735 = vadd.f32 %v2659, %v2698
    %v2736 = vadd.f32 %v2660, %v2702
    %v2737 = vadd.f32 %v2661, %v2698
    %v2738 = vadd.f32 %v2662, %v2702
    %v2739 = vadd.f32 %v2663, %v2698
    %v2740 = vadd.f32 %v2664, %v2702
    %v2741 = vadd.f32 %v2665, %v2698
    %v2742 = vadd.f32 %v2666, %v2702
    %v2743 = vadd.f32 %v2667, %v2698
    %v2744 = vadd.f32 %v2668, %v2702
    %v2745 = vadd.f32 %v2669, %v2698
    %v2746 = vadd.f32 %v2670, %v2702
    %v2747 = vadd.f32 %v2671, %v2698
    %v2748 = vadd.f32 %v2672, %v2702
    %v2749 = vadd.f32 %v2673, %v2698
    %v2750 = vadd.f32 %v2674, %v2702
    %v2751 = vadd.f32 %v2675, %v2698
    %v2752 = vadd.f32 %v2676, %v2702
    %v2753 = vadd.f32 %v2677, %v2698
    %v2754 = vadd.f32 %v2678, %v2702
    %v2755 = vadd.f32 %v2679, %v2698
    %v2756 = vadd.f32 %v2680, %v2702
    %v2757 = vadd.f32 %v2681, %v2698
    %v2758 = vadd.f32 %v2682, %v2702
    %v2759 = vadd.f32 %v2683, %v2698
    %v2760 = vadd.f32 %v2684, %v2702
    %v2761 = vadd.f32 %v2685, %v2698
    %v2762 = vadd.f32 %v2686, %v2702
    %v2763 = vadd.f32 %v2687, %v2698
    %v2764 = vadd.f32 %v2688, %v2702
    %v2765 = vadd.f32 %v2689, %v2698
    %v2766 = vadd.f32 %v2690, %v2702
    %v2767 = vadd.f32 %v2691, %v2698
    %v2768 = vadd.f32 %v2692, %v2702
    %2769 = vst [vmem:[#allocation14] sm:$0xff] %v2705
    %2770 = vst [vmem:[#allocation14 + $0x8] sm:$0xff] %v2706
    %2771 = vst [vmem:[#allocation14 + $0x10] sm:$0xff] %v2707
    %2772 = vst [vmem:[#allocation14 + $0x18] sm:$0xff] %v2708
    %2773 = vst [vmem:[#allocation14 + $0x20] sm:$0xff] %v2709
    %2774 = vst [vmem:[#allocation14 + $0x28] sm:$0xff] %v2710
    %2775 = vst [vmem:[#allocation14 + $0x30] sm:$0xff] %v2711
    %2776 = vst [vmem:[#allocation14 + $0x38] sm:$0xff] %v2712
    %2777 = vst [vmem:[#allocation14 + $0x40] sm:$0xff] %v2713
    %2778 = vst [vmem:[#allocation14 + $0x48] sm:$0xff] %v2714
    %2779 = vst [vmem:[#allocation14 + $0x50] sm:$0xff] %v2715
    %2780 = vst [vmem:[#allocation14 + $0x58] sm:$0xff] %v2716
    %2781 = vst [vmem:[#allocation14 + $0x60] sm:$0xff] %v2717
    %2782 = vst [vmem:[#allocation14 + $0x68] sm:$0xff] %v2718
    %2783 = vst [vmem:[#allocation14 + $0x70] sm:$0xff] %v2719
    %2784 = vst [vmem:[#allocation14 + $0x78] sm:$0xff] %v2720
    %2785 = vst [vmem:[#allocation14 + $0x80] sm:$0xff] %v2721
    %2786 = vst [vmem:[#allocation14 + $0x88] sm:$0xff] %v2722
    %2787 = vst [vmem:[#allocation14 + $0x90] sm:$0xff] %v2723
    %2788 = vst [vmem:[#allocation14 + $0x98] sm:$0xff] %v2724
    %2789 = vst [vmem:[#allocation14 + $0xa0] sm:$0xff] %v2725
    %2790 = vst [vmem:[#allocation14 + $0xa8] sm:$0xff] %v2726
    %2791 = vst [vmem:[#allocation14 + $0xb0] sm:$0xff] %v2727
    %2792 = vst [vmem:[#allocation14 + $0xb8] sm:$0xff] %v2728
    %2793 = vst [vmem:[#allocation14 + $0xc0] sm:$0xff] %v2729
    %2794 = vst [vmem:[#allocation14 + $0xc8] sm:$0xff] %v2730
    %2795 = vst [vmem:[#allocation14 + $0xd0] sm:$0xff] %v2731
    %2796 = vst [vmem:[#allocation14 + $0xd8] sm:$0xff] %v2732
    %2797 = vst [vmem:[#allocation14 + $0xe0] sm:$0xff] %v2733
    %2798 = vst [vmem:[#allocation14 + $0xe8] sm:$0xff] %v2734
    %2799 = vst [vmem:[#allocation14 + $0xf0] sm:$0xff] %v2735
    %2800 = vst [vmem:[#allocation14 + $0xf8] sm:$0xff] %v2736
    %2801 = vst [vmem:[#allocation14 + $0x100] sm:$0xff] %v2737
    %2802 = vst [vmem:[#allocation14 + $0x108] sm:$0xff] %v2738
    %2803 = vst [vmem:[#allocation14 + $0x110] sm:$0xff] %v2739
    %2804 = vst [vmem:[#allocation14 + $0x118] sm:$0xff] %v2740
    %2805 = vst [vmem:[#allocation14 + $0x120] sm:$0xff] %v2741
    %2806 = vst [vmem:[#allocation14 + $0x128] sm:$0xff] %v2742
    %2807 = vst [vmem:[#allocation14 + $0x130] sm:$0xff] %v2743
    %2808 = vst [vmem:[#allocation14 + $0x138] sm:$0xff] %v2744
    %2809 = vst [vmem:[#allocation14 + $0x140] sm:$0xff] %v2745
    %2810 = vst [vmem:[#allocation14 + $0x148] sm:$0xff] %v2746
    %2811 = vst [vmem:[#allocation14 + $0x150] sm:$0xff] %v2747
    %2812 = vst [vmem:[#allocation14 + $0x158] sm:$0xff] %v2748
    %2813 = vst [vmem:[#allocation14 + $0x160] sm:$0xff] %v2749
    %2814 = vst [vmem:[#allocation14 + $0x168] sm:$0xff] %v2750
    %2815 = vst [vmem:[#allocation14 + $0x170] sm:$0xff] %v2751
    %2816 = vst [vmem:[#allocation14 + $0x178] sm:$0xff] %v2752
    %2817 = vst [vmem:[#allocation14 + $0x180] sm:$0xff] %v2753
    %2818 = vst [vmem:[#allocation14 + $0x188] sm:$0xff] %v2754
    %2819 = vst [vmem:[#allocation14 + $0x190] sm:$0xff] %v2755
    %2820 = vst [vmem:[#allocation14 + $0x198] sm:$0xff] %v2756
    %2821 = vst [vmem:[#allocation14 + $0x1a0] sm:$0xff] %v2757
    %2822 = vst [vmem:[#allocation14 + $0x1a8] sm:$0xff] %v2758
    %2823 = vst [vmem:[#allocation14 + $0x1b0] sm:$0xff] %v2759
    %2824 = vst [vmem:[#allocation14 + $0x1b8] sm:$0xff] %v2760
    %2825 = vst [vmem:[#allocation14 + $0x1c0] sm:$0xff] %v2761
    %2826 = vst [vmem:[#allocation14 + $0x1c8] sm:$0xff] %v2762
    %2827 = vst [vmem:[#allocation14 + $0x1d0] sm:$0xff] %v2763
    %2828 = vst [vmem:[#allocation14 + $0x1d8] sm:$0xff] %v2764
    %2829 = vst [vmem:[#allocation14 + $0x1e0] sm:$0xff] %v2765
    %2830 = vst [vmem:[#allocation14 + $0x1e8] sm:$0xff] %v2766
    %2831 = vst [vmem:[#allocation14 + $0x1f0] sm:$0xff] %v2767
    %2832 = vst [vmem:[#allocation14 + $0x1f8] sm:$0xff] %v2768
    // Predicated region
    $region58: #{tpu_custom_call.1} parent=1 // pred_check
      _
    $region59: #{tpu_custom_call.1} parent=1 // pred_check_branch
      %2834 = sbr.rel (0) target = $region61
    $region60: #{tpu_custom_call.1} parent=1 // pred_region
      %s2836 = ssub.s32 8192, 8192
      %2837 = vsyncadd [#allocation4], %s2836
      %s2838 = sshll.u32 [#allocation14], 4
      %s2839 = int_to_ptr.vmem [resolvable:$true] %s2838
      %2844 = dma.vmem_to_hbm [thread:$0]  %s2839, 8192, %s7, [#allocation4], 256, 256, 16
    $region61: #{tpu_custom_call.1} parent=1 // pred_fallthru
      _
    // Predicated region
    $region62: #{tpu_custom_call.1} parent=1 // pred_check
      _
    $region63: #{tpu_custom_call.1} parent=1 // pred_check_branch
      %2846 = sbr.rel (0) target = $region65
    $region64: #{tpu_custom_call.1} parent=1 // pred_region
      %2847 = dma.done [#allocation4], 8192
    $region65: #{tpu_custom_call.1} parent=1 // pred_fallthru
      _
    %2848 = vsyncpa [#allocation3], 1
    %2849 = vsyncpa [#allocation6], 1
    %2850 = vsyncpa [#allocation9], 1
    %2851 = vsyncpa [#allocation12], 1
    %2852 = vsyncpa [#allocation4], 1

</llo_original>
